<compile_context>
chip_gen: v5e
topology: v5e:2x2
jax: 0.10.0
libtpu: 0.0.40
codegen_flags: <defaults>
</compile_context>

<pallas_src>
import jax
import jax.numpy as jnp
from jax import lax
from jax.experimental import pallas as pl
from jax.experimental.pallas import tpu as pltpu


# ----------------------------------------------------------------------------
# Fused Pallas kernel
# ----------------------------------------------------------------------------
def _lstm_dqn_kernel(obs_ref, cmd_ref, emb_ref,
                     wih_e_ref, whh_e_ref, b_e_ref,
                     wih_s_ref, whh_s_ref, b_s_ref, h0_s_ref, c0_s_ref,
                     wih_c_ref, whh_c_ref, b_c_ref,
                     att_w_ref, att_b_ref,
                     scores_ref):
    """Whole LSTM_DQN forward in one kernel.

    obs_ref : (L, 1)     int32 token ids (VMEM)
    cmd_ref : (Lc*C, 1)  int32 token ids, row t*C+j == commands[t, j] (VMEM)
    emb_ref : (V, H)     embedding table (VMEM)
    wih_*   : (H, 4H)    = torch weight_ih_l0.T
    whh_*   : (H, 4H)    = torch weight_hh_l0.T
    b_*     : (1, 4H)    = bias_ih_l0 + bias_hh_l0
    h0_s/c0_s : (1, H)   state-encoder initial hidden (torch self.hidden)
    att_w   : (1, 2H)    torch att_cmd.weight (NOT transposed)
    att_b   : (1, 1)
    scores  : (C, 1)     output = relu(att_cmd([state_h, cmd_h]))
    """
    V, H = emb_ref.shape
    L = obs_ref.shape[0]
    C = scores_ref.shape[0]
    Lc = cmd_ref.shape[0] // C

    emb = emb_ref[...]                                            # (V, H)

    def onehot_gather(ids):
        # ids: (N, 1) int32 -> (N, H) embedding rows via exact one-hot MXU matmul.
        n = ids.shape[0]
        iota = lax.broadcasted_iota(jnp.int32, (n, V), 1)
        onehot = (iota == ids).astype(jnp.float32)                # (N, V)
        return jnp.dot(onehot, emb, preferred_element_type=jnp.float32)

    def lstm_step(xp_t, h, c, whh):
        # xp_t: (B, 4H) precomputed x@W_ih + b ; h, c: (B, H)
        gates = xp_t + jnp.dot(h, whh, preferred_element_type=jnp.float32)
        i = jax.nn.sigmoid(gates[:, 0 * H:1 * H])
        f = jax.nn.sigmoid(gates[:, 1 * H:2 * H])
        g = jnp.tanh(gates[:, 2 * H:3 * H])
        o = jax.nn.sigmoid(gates[:, 3 * H:4 * H])
        c_new = f * c + i * g
        h_new = o * jnp.tanh(c_new)
        return h_new, c_new

    # ---- encoder LSTM over obs (unbatched: B = 1) ---------------------------
    x_obs = onehot_gather(obs_ref[...])                           # (L, H)
    xp_obs = (jnp.dot(x_obs, wih_e_ref[...],
                      preferred_element_type=jnp.float32)
              + b_e_ref[...])                                     # (L, 4H)
    whh_e = whh_e_ref[...]
    h = jnp.zeros((1, H), jnp.float32)
    c = jnp.zeros((1, H), jnp.float32)
    for t in range(L):                                            # fully unrolled
        h, c = lstm_step(xp_obs[t:t + 1, :], h, c, whh_e)
    h_enc = h

    # ---- state LSTM: single step on h_enc with external hidden --------------
    xp_s = (jnp.dot(h_enc, wih_s_ref[...],
                    preferred_element_type=jnp.float32)
            + b_s_ref[...])                                       # (1, 4H)
    state_h, _state_c = lstm_step(xp_s, h0_s_ref[...], c0_s_ref[...],
                                  whh_s_ref[...])

    # ---- cmd LSTM over commands (batch = C) ---------------------------------
    x_cmd = onehot_gather(cmd_ref[...])                           # (Lc*C, H)
    xp_cmd = (jnp.dot(x_cmd, wih_c_ref[...],
                      preferred_element_type=jnp.float32)
              + b_c_ref[...])                                     # (Lc*C, 4H)
    whh_c = whh_c_ref[...]
    h = jnp.zeros((C, H), jnp.float32)
    c = jnp.zeros((C, H), jnp.float32)
    for t in range(Lc):                                           # fully unrolled
        h, c = lstm_step(xp_cmd[t * C:(t + 1) * C, :], h, c, whh_c)
    cmd_h = h                                                     # (C, H)

    # ---- command scorer: relu(att_cmd([state_h, cmd_h_j])) ------------------
    # No broadcast_to / concatenate: split att_w by lane slices and use
    # VPU multiply + lane reduction (state term is a single (1,1) scalar).
    att_w = att_w_ref[...]                                        # (1, 2H)
    s = jnp.sum(state_h * att_w[:, 0:H], axis=-1, keepdims=True)  # (1, 1)
    logits = (jnp.sum(cmd_h * att_w[:, H:2 * H], axis=-1, keepdims=True)
              + s + att_b_ref[...])                               # (C, 1)
    scores_ref[...] = jnp.maximum(logits, 0.0)
    # critic(state_output) is discarded by the torch forward -> not computed.


# ----------------------------------------------------------------------------
# Wrapper
# ----------------------------------------------------------------------------
_VMEM = pl.BlockSpec(memory_space=pltpu.MemorySpace.VMEM)


def lstm_dqn_forward(params, obs, commands, state_hidden=None):
    """Pallas implementation of LSTM_DQN.forward; returns scores of shape (C,)."""
    emb = params["emb"]
    H = emb.shape[1]
    C = commands.shape[1]

    if state_hidden is None:
        zeros = jnp.zeros((1, H), jnp.float32)
        state_hidden = (zeros, zeros)      # torch self.hidden default
    h0_s, c0_s = state_hidden

    wih_e, whh_e, b_e = params["encoder"]
    wih_s, whh_s, b_s = params["state_encoder"]
    wih_c, whh_c, b_c = params["cmd_encoder"]

    obs_ids = obs.astype(jnp.int32).reshape(-1, 1)          # (L, 1)
    cmd_ids = commands.astype(jnp.int32).reshape(-1, 1)     # (Lc*C, 1), row t*C+j

    scores = pl.pallas_call(
        _lstm_dqn_kernel,
        out_shape=jax.ShapeDtypeStruct((C, 1), jnp.float32),
        in_specs=[_VMEM] * 16,
        out_specs=_VMEM,
    )(obs_ids, cmd_ids, emb,
      wih_e, whh_e, b_e,
      wih_s, whh_s, b_s, h0_s, c0_s,
      wih_c, whh_c, b_c,
      params["att_w"], params["att_b"])

    return scores.reshape(C)


# ----------------------------------------------------------------------------
# Deterministic parameter init (matches torch module shapes)
# ----------------------------------------------------------------------------
def init_params(key, vocab, H):
    ks = jax.random.split(key, 8)
    bound = 1.0 / jnp.sqrt(jnp.float32(H))

    def unif(k, shape):
        return jax.random.uniform(k, shape, jnp.float32, -bound, bound)

    def lstm_params(k):
        k1, k2, k3, k4 = jax.random.split(k, 4)
        wih = unif(k1, (4 * H, H))      # torch weight_ih_l0
        whh = unif(k2, (4 * H, H))      # torch weight_hh_l0
        bih = unif(k3, (4 * H,))
        bhh = unif(k4, (4 * H,))
        return (wih.T, whh.T, (bih + bhh).reshape(1, 4 * H))

    return {
        "emb": jax.random.normal(ks[0], (vocab, H), jnp.float32),  # nn.Embedding ~ N(0,1)
        "encoder": lstm_params(ks[1]),
        "cmd_encoder": lstm_params(ks[2]),
        "state_encoder": lstm_params(ks[3]),
        # critic: Linear(H, 1) — dead compute in forward, kept only for parity.
        "crit_w": unif(ks[4], (1, H)),
        "crit_b": unif(ks[5], (1, 1)),
        "att_w": unif(ks[6], (1, 2 * H)),     # att_cmd.weight, torch layout (1, 2H)
        "att_b": unif(ks[7], (1, 1)),
    }


# ----------------------------------------------------------------------------
# Pure-JAX reference (for correctness check)
# ----------------------------------------------------------------------------
def _lstm_ref(x, h0, c0, wih_t, whh_t, b):
    def step(carry, x_t):
        h, c = carry
        gates = x_t @ wih_t + h @ whh_t + b
        i, f, g, o = jnp.split(gates, 4, axis=-1)
        c = jax.nn.sigmoid(f) * c + jax.nn.sigmoid(i) * jnp.tanh(g)
        h = jax.nn.sigmoid(o) * jnp.tanh(c)
        return (h, c), None
    (h, c), _ = lax.scan(step, (h0, c0), x)
    return h, c


def ref_forward(params, obs, commands):
    emb = params["emb"]
    H = emb.shape[1]
    L = obs.shape[0]
    Lc, C = commands.shape
    embedded = jnp.take(emb, obs, axis=0).reshape(L, 1, H)
    cmd_emb = jnp.take(emb, commands.reshape(-1), axis=0).reshape(Lc, C, H)
    zeros1 = jnp.zeros((1, H), jnp.float32)
    zerosC = jnp.zeros((C, H), jnp.float32)
    h_enc, _ = _lstm_ref(embedded, zeros1, zeros1, *params["encoder"])
    state_h, _ = _lstm_ref(h_enc.reshape(1, 1, H), zeros1, zeros1,
                           *params["state_encoder"])
    cmd_h, _ = _lstm_ref(cmd_emb, zerosC, zerosC, *params["cmd_encoder"])
    sel = jnp.concatenate([jnp.broadcast_to(state_h, (C, H)), cmd_h], axis=-1)
    scores = jnp.maximum(sel @ params["att_w"].T + params["att_b"], 0.0)
    return scores.reshape(C)


if __name__ == "__main__":
    vocab, H = 50, 32          # input_size=50, hidden_size=32
    L, Lc, C = 8, 6, 5         # obs length, command length, num commands

    key = jax.random.PRNGKey(0)
    kp, ko, kc = jax.random.split(key, 3)
    params = init_params(kp, vocab, H)
    obs = jax.random.randint(ko, (L,), 0, vocab, jnp.int32)
    commands = jax.random.randint(kc, (Lc, C), 0, vocab, jnp.int32)

    fwd = jax.jit(lstm_dqn_forward)
    scores = fwd(params, obs, commands)
    scores = jax.block_until_ready(scores)

    ref = ref_forward(params, obs, commands)
    assert scores.shape == (C,), scores.shape
    assert jnp.allclose(scores, ref, atol=1e-5, rtol=1e-5), (scores, ref)
    print("KERNEL_OK")
</pallas_src>

<mosaic_0001>
module attributes {stable_mosaic.version = 11 : i64} {
  func.func @_lstm_dqn_kernel(%arg0: memref<8x1xi32, #tpu.memory_space<vmem>>, %arg1: memref<30x1xi32, #tpu.memory_space<vmem>>, %arg2: memref<50x32xf32, #tpu.memory_space<vmem>>, %arg3: memref<32x128xf32, #tpu.memory_space<vmem>>, %arg4: memref<32x128xf32, #tpu.memory_space<vmem>>, %arg5: memref<1x128xf32, #tpu.memory_space<vmem>>, %arg6: memref<32x128xf32, #tpu.memory_space<vmem>>, %arg7: memref<32x128xf32, #tpu.memory_space<vmem>>, %arg8: memref<1x128xf32, #tpu.memory_space<vmem>>, %arg9: memref<1x32xf32, #tpu.memory_space<vmem>>, %arg10: memref<1x32xf32, #tpu.memory_space<vmem>>, %arg11: memref<32x128xf32, #tpu.memory_space<vmem>>, %arg12: memref<32x128xf32, #tpu.memory_space<vmem>>, %arg13: memref<1x128xf32, #tpu.memory_space<vmem>>, %arg14: memref<1x64xf32, #tpu.memory_space<vmem>>, %arg15: memref<1x1xf32, #tpu.memory_space<vmem>>, %arg16: memref<5x1xf32, #tpu.memory_space<vmem>>) attributes {dimension_semantics = [], scalar_prefetch = 0 : i64, scratch_operands = 0 : i64, tpu.core_type = #tpu.core_type<tc>} {
    %c0 = arith.constant 0 : index
    %c0_0 = arith.constant 0 : index
    %0 = vector.load %arg2[%c0, %c0_0] : memref<50x32xf32, #tpu.memory_space<vmem>>, vector<50x32xf32>
    %c0_1 = arith.constant 0 : index
    %c0_2 = arith.constant 0 : index
    %1 = vector.load %arg0[%c0_1, %c0_2] : memref<8x1xi32, #tpu.memory_space<vmem>>, vector<8x1xi32>
    %2 = tpu.iota {dimensions = array<i32: 1>} : vector<8x50xi32>
    %3 = vector.broadcast %1 : vector<8x1xi32> to vector<8x50xi32>
    %4 = arith.cmpi eq, %2, %3 : vector<8x50xi32>
    %5 = arith.extui %4 : vector<8x50xi1> to vector<8x50xi32>
    %6 = arith.sitofp %5 : vector<8x50xi32> to vector<8x50xf32>
    %cst = arith.constant dense<0.000000e+00> : vector<8x32xf32>
    %7 = tpu.matmul %6, %0, %cst {dimension_numbers = #tpu.dot_dimension_numbers<[1], [0], [0], [1], [0, 0, 1, 1], [], []>} : vector<8x50xf32>, vector<50x32xf32>, vector<8x32xf32> -> vector<8x32xf32>
    %c0_3 = arith.constant 0 : index
    %c0_4 = arith.constant 0 : index
    %8 = vector.load %arg3[%c0_3, %c0_4] : memref<32x128xf32, #tpu.memory_space<vmem>>, vector<32x128xf32>
    %cst_5 = arith.constant dense<0.000000e+00> : vector<8x128xf32>
    %9 = tpu.matmul %7, %8, %cst_5 {dimension_numbers = #tpu.dot_dimension_numbers<[1], [0], [0], [1], [0, 0, 1, 1], [], []>} : vector<8x32xf32>, vector<32x128xf32>, vector<8x128xf32> -> vector<8x128xf32>
    %c0_6 = arith.constant 0 : index
    %c0_7 = arith.constant 0 : index
    %10 = vector.load %arg5[%c0_6, %c0_7] : memref<1x128xf32, #tpu.memory_space<vmem>>, vector<1x128xf32>
    %11 = vector.broadcast %10 : vector<1x128xf32> to vector<8x128xf32>
    %12 = arith.addf %9, %11 : vector<8x128xf32>
    %c0_8 = arith.constant 0 : index
    %c0_9 = arith.constant 0 : index
    %13 = vector.load %arg4[%c0_8, %c0_9] : memref<32x128xf32, #tpu.memory_space<vmem>>, vector<32x128xf32>
    %cst_10 = arith.constant 0.000000e+00 : f32
    %14 = vector.broadcast %cst_10 : f32 to vector<1x32xf32>
    %cst_11 = arith.constant 0.000000e+00 : f32
    %15 = vector.broadcast %cst_11 : f32 to vector<1x32xf32>
    %16 = vector.extract_strided_slice %12 {offsets = [0, 0], sizes = [1, 128], strides = [1, 1]} : vector<8x128xf32> to vector<1x128xf32>
    %cst_12 = arith.constant dense<0.000000e+00> : vector<1x128xf32>
    %17 = tpu.matmul %14, %13, %cst_12 {dimension_numbers = #tpu.dot_dimension_numbers<[1], [0], [0], [1], [0, 0, 1, 1], [], []>} : vector<1x32xf32>, vector<32x128xf32>, vector<1x128xf32> -> vector<1x128xf32>
    %18 = arith.addf %16, %17 : vector<1x128xf32>
    %19 = vector.extract_strided_slice %18 {offsets = [0, 0], sizes = [1, 32], strides = [1, 1]} : vector<1x128xf32> to vector<1x32xf32>
    %20 = arith.negf %19 : vector<1x32xf32>
    %21 = math.exp %20 : vector<1x32xf32>
    %cst_13 = arith.constant 1.000000e+00 : f32
    %22 = vector.broadcast %cst_13 : f32 to vector<1x32xf32>
    %23 = arith.addf %22, %21 : vector<1x32xf32>
    %24 = arith.divf %22, %23 : vector<1x32xf32>
    %25 = vector.extract_strided_slice %18 {offsets = [0, 32], sizes = [1, 32], strides = [1, 1]} : vector<1x128xf32> to vector<1x32xf32>
    %26 = arith.negf %25 : vector<1x32xf32>
    %27 = math.exp %26 : vector<1x32xf32>
    %cst_14 = arith.constant 1.000000e+00 : f32
    %28 = vector.broadcast %cst_14 : f32 to vector<1x32xf32>
    %29 = arith.addf %28, %27 : vector<1x32xf32>
    %30 = arith.divf %28, %29 : vector<1x32xf32>
    %31 = vector.extract_strided_slice %18 {offsets = [0, 64], sizes = [1, 32], strides = [1, 1]} : vector<1x128xf32> to vector<1x32xf32>
    %32 = math.tanh %31 : vector<1x32xf32>
    %33 = vector.extract_strided_slice %18 {offsets = [0, 96], sizes = [1, 32], strides = [1, 1]} : vector<1x128xf32> to vector<1x32xf32>
    %34 = arith.negf %33 : vector<1x32xf32>
    %35 = math.exp %34 : vector<1x32xf32>
    %cst_15 = arith.constant 1.000000e+00 : f32
    %36 = vector.broadcast %cst_15 : f32 to vector<1x32xf32>
    %37 = arith.addf %36, %35 : vector<1x32xf32>
    %38 = arith.divf %36, %37 : vector<1x32xf32>
    %39 = arith.mulf %30, %15 : vector<1x32xf32>
    %40 = arith.mulf %24, %32 : vector<1x32xf32>
    %41 = arith.addf %39, %40 : vector<1x32xf32>
    %42 = math.tanh %41 : vector<1x32xf32>
    %43 = arith.mulf %38, %42 : vector<1x32xf32>
    %44 = vector.extract_strided_slice %12 {offsets = [1, 0], sizes = [1, 128], strides = [1, 1]} : vector<8x128xf32> to vector<1x128xf32>
    %cst_16 = arith.constant dense<0.000000e+00> : vector<1x128xf32>
    %45 = tpu.matmul %43, %13, %cst_16 {dimension_numbers = #tpu.dot_dimension_numbers<[1], [0], [0], [1], [0, 0, 1, 1], [], []>} : vector<1x32xf32>, vector<32x128xf32>, vector<1x128xf32> -> vector<1x128xf32>
    %46 = arith.addf %44, %45 : vector<1x128xf32>
    %47 = vector.extract_strided_slice %46 {offsets = [0, 0], sizes = [1, 32], strides = [1, 1]} : vector<1x128xf32> to vector<1x32xf32>
    %48 = arith.negf %47 : vector<1x32xf32>
    %49 = math.exp %48 : vector<1x32xf32>
    %cst_17 = arith.constant 1.000000e+00 : f32
    %50 = vector.broadcast %cst_17 : f32 to vector<1x32xf32>
    %51 = arith.addf %50, %49 : vector<1x32xf32>
    %52 = arith.divf %50, %51 : vector<1x32xf32>
    %53 = vector.extract_strided_slice %46 {offsets = [0, 32], sizes = [1, 32], strides = [1, 1]} : vector<1x128xf32> to vector<1x32xf32>
    %54 = arith.negf %53 : vector<1x32xf32>
    %55 = math.exp %54 : vector<1x32xf32>
    %cst_18 = arith.constant 1.000000e+00 : f32
    %56 = vector.broadcast %cst_18 : f32 to vector<1x32xf32>
    %57 = arith.addf %56, %55 : vector<1x32xf32>
    %58 = arith.divf %56, %57 : vector<1x32xf32>
    %59 = vector.extract_strided_slice %46 {offsets = [0, 64], sizes = [1, 32], strides = [1, 1]} : vector<1x128xf32> to vector<1x32xf32>
    %60 = math.tanh %59 : vector<1x32xf32>
    %61 = vector.extract_strided_slice %46 {offsets = [0, 96], sizes = [1, 32], strides = [1, 1]} : vector<1x128xf32> to vector<1x32xf32>
    %62 = arith.negf %61 : vector<1x32xf32>
    %63 = math.exp %62 : vector<1x32xf32>
    %cst_19 = arith.constant 1.000000e+00 : f32
    %64 = vector.broadcast %cst_19 : f32 to vector<1x32xf32>
    %65 = arith.addf %64, %63 : vector<1x32xf32>
    %66 = arith.divf %64, %65 : vector<1x32xf32>
    %67 = arith.mulf %58, %41 : vector<1x32xf32>
    %68 = arith.mulf %52, %60 : vector<1x32xf32>
    %69 = arith.addf %67, %68 : vector<1x32xf32>
    %70 = math.tanh %69 : vector<1x32xf32>
    %71 = arith.mulf %66, %70 : vector<1x32xf32>
    %72 = vector.extract_strided_slice %12 {offsets = [2, 0], sizes = [1, 128], strides = [1, 1]} : vector<8x128xf32> to vector<1x128xf32>
    %cst_20 = arith.constant dense<0.000000e+00> : vector<1x128xf32>
    %73 = tpu.matmul %71, %13, %cst_20 {dimension_numbers = #tpu.dot_dimension_numbers<[1], [0], [0], [1], [0, 0, 1, 1], [], []>} : vector<1x32xf32>, vector<32x128xf32>, vector<1x128xf32> -> vector<1x128xf32>
    %74 = arith.addf %72, %73 : vector<1x128xf32>
    %75 = vector.extract_strided_slice %74 {offsets = [0, 0], sizes = [1, 32], strides = [1, 1]} : vector<1x128xf32> to vector<1x32xf32>
    %76 = arith.negf %75 : vector<1x32xf32>
    %77 = math.exp %76 : vector<1x32xf32>
    %cst_21 = arith.constant 1.000000e+00 : f32
    %78 = vector.broadcast %cst_21 : f32 to vector<1x32xf32>
    %79 = arith.addf %78, %77 : vector<1x32xf32>
    %80 = arith.divf %78, %79 : vector<1x32xf32>
    %81 = vector.extract_strided_slice %74 {offsets = [0, 32], sizes = [1, 32], strides = [1, 1]} : vector<1x128xf32> to vector<1x32xf32>
    %82 = arith.negf %81 : vector<1x32xf32>
    %83 = math.exp %82 : vector<1x32xf32>
    %cst_22 = arith.constant 1.000000e+00 : f32
    %84 = vector.broadcast %cst_22 : f32 to vector<1x32xf32>
    %85 = arith.addf %84, %83 : vector<1x32xf32>
    %86 = arith.divf %84, %85 : vector<1x32xf32>
    %87 = vector.extract_strided_slice %74 {offsets = [0, 64], sizes = [1, 32], strides = [1, 1]} : vector<1x128xf32> to vector<1x32xf32>
    %88 = math.tanh %87 : vector<1x32xf32>
    %89 = vector.extract_strided_slice %74 {offsets = [0, 96], sizes = [1, 32], strides = [1, 1]} : vector<1x128xf32> to vector<1x32xf32>
    %90 = arith.negf %89 : vector<1x32xf32>
    %91 = math.exp %90 : vector<1x32xf32>
    %cst_23 = arith.constant 1.000000e+00 : f32
    %92 = vector.broadcast %cst_23 : f32 to vector<1x32xf32>
    %93 = arith.addf %92, %91 : vector<1x32xf32>
    %94 = arith.divf %92, %93 : vector<1x32xf32>
    %95 = arith.mulf %86, %69 : vector<1x32xf32>
    %96 = arith.mulf %80, %88 : vector<1x32xf32>
    %97 = arith.addf %95, %96 : vector<1x32xf32>
    %98 = math.tanh %97 : vector<1x32xf32>
    %99 = arith.mulf %94, %98 : vector<1x32xf32>
    %100 = vector.extract_strided_slice %12 {offsets = [3, 0], sizes = [1, 128], strides = [1, 1]} : vector<8x128xf32> to vector<1x128xf32>
    %cst_24 = arith.constant dense<0.000000e+00> : vector<1x128xf32>
    %101 = tpu.matmul %99, %13, %cst_24 {dimension_numbers = #tpu.dot_dimension_numbers<[1], [0], [0], [1], [0, 0, 1, 1], [], []>} : vector<1x32xf32>, vector<32x128xf32>, vector<1x128xf32> -> vector<1x128xf32>
    %102 = arith.addf %100, %101 : vector<1x128xf32>
    %103 = vector.extract_strided_slice %102 {offsets = [0, 0], sizes = [1, 32], strides = [1, 1]} : vector<1x128xf32> to vector<1x32xf32>
    %104 = arith.negf %103 : vector<1x32xf32>
    %105 = math.exp %104 : vector<1x32xf32>
    %cst_25 = arith.constant 1.000000e+00 : f32
    %106 = vector.broadcast %cst_25 : f32 to vector<1x32xf32>
    %107 = arith.addf %106, %105 : vector<1x32xf32>
    %108 = arith.divf %106, %107 : vector<1x32xf32>
    %109 = vector.extract_strided_slice %102 {offsets = [0, 32], sizes = [1, 32], strides = [1, 1]} : vector<1x128xf32> to vector<1x32xf32>
    %110 = arith.negf %109 : vector<1x32xf32>
    %111 = math.exp %110 : vector<1x32xf32>
    %cst_26 = arith.constant 1.000000e+00 : f32
    %112 = vector.broadcast %cst_26 : f32 to vector<1x32xf32>
    %113 = arith.addf %112, %111 : vector<1x32xf32>
    %114 = arith.divf %112, %113 : vector<1x32xf32>
    %115 = vector.extract_strided_slice %102 {offsets = [0, 64], sizes = [1, 32], strides = [1, 1]} : vector<1x128xf32> to vector<1x32xf32>
    %116 = math.tanh %115 : vector<1x32xf32>
    %117 = vector.extract_strided_slice %102 {offsets = [0, 96], sizes = [1, 32], strides = [1, 1]} : vector<1x128xf32> to vector<1x32xf32>
    %118 = arith.negf %117 : vector<1x32xf32>
    %119 = math.exp %118 : vector<1x32xf32>
    %cst_27 = arith.constant 1.000000e+00 : f32
    %120 = vector.broadcast %cst_27 : f32 to vector<1x32xf32>
    %121 = arith.addf %120, %119 : vector<1x32xf32>
    %122 = arith.divf %120, %121 : vector<1x32xf32>
    %123 = arith.mulf %114, %97 : vector<1x32xf32>
    %124 = arith.mulf %108, %116 : vector<1x32xf32>
    %125 = arith.addf %123, %124 : vector<1x32xf32>
    %126 = math.tanh %125 : vector<1x32xf32>
    %127 = arith.mulf %122, %126 : vector<1x32xf32>
    %128 = vector.extract_strided_slice %12 {offsets = [4, 0], sizes = [1, 128], strides = [1, 1]} : vector<8x128xf32> to vector<1x128xf32>
    %cst_28 = arith.constant dense<0.000000e+00> : vector<1x128xf32>
    %129 = tpu.matmul %127, %13, %cst_28 {dimension_numbers = #tpu.dot_dimension_numbers<[1], [0], [0], [1], [0, 0, 1, 1], [], []>} : vector<1x32xf32>, vector<32x128xf32>, vector<1x128xf32> -> vector<1x128xf32>
    %130 = arith.addf %128, %129 : vector<1x128xf32>
    %131 = vector.extract_strided_slice %130 {offsets = [0, 0], sizes = [1, 32], strides = [1, 1]} : vector<1x128xf32> to vector<1x32xf32>
    %132 = arith.negf %131 : vector<1x32xf32>
    %133 = math.exp %132 : vector<1x32xf32>
    %cst_29 = arith.constant 1.000000e+00 : f32
    %134 = vector.broadcast %cst_29 : f32 to vector<1x32xf32>
    %135 = arith.addf %134, %133 : vector<1x32xf32>
    %136 = arith.divf %134, %135 : vector<1x32xf32>
    %137 = vector.extract_strided_slice %130 {offsets = [0, 32], sizes = [1, 32], strides = [1, 1]} : vector<1x128xf32> to vector<1x32xf32>
    %138 = arith.negf %137 : vector<1x32xf32>
    %139 = math.exp %138 : vector<1x32xf32>
    %cst_30 = arith.constant 1.000000e+00 : f32
    %140 = vector.broadcast %cst_30 : f32 to vector<1x32xf32>
    %141 = arith.addf %140, %139 : vector<1x32xf32>
    %142 = arith.divf %140, %141 : vector<1x32xf32>
    %143 = vector.extract_strided_slice %130 {offsets = [0, 64], sizes = [1, 32], strides = [1, 1]} : vector<1x128xf32> to vector<1x32xf32>
    %144 = math.tanh %143 : vector<1x32xf32>
    %145 = vector.extract_strided_slice %130 {offsets = [0, 96], sizes = [1, 32], strides = [1, 1]} : vector<1x128xf32> to vector<1x32xf32>
    %146 = arith.negf %145 : vector<1x32xf32>
    %147 = math.exp %146 : vector<1x32xf32>
    %cst_31 = arith.constant 1.000000e+00 : f32
    %148 = vector.broadcast %cst_31 : f32 to vector<1x32xf32>
    %149 = arith.addf %148, %147 : vector<1x32xf32>
    %150 = arith.divf %148, %149 : vector<1x32xf32>
    %151 = arith.mulf %142, %125 : vector<1x32xf32>
    %152 = arith.mulf %136, %144 : vector<1x32xf32>
    %153 = arith.addf %151, %152 : vector<1x32xf32>
    %154 = math.tanh %153 : vector<1x32xf32>
    %155 = arith.mulf %150, %154 : vector<1x32xf32>
    %156 = vector.extract_strided_slice %12 {offsets = [5, 0], sizes = [1, 128], strides = [1, 1]} : vector<8x128xf32> to vector<1x128xf32>
    %cst_32 = arith.constant dense<0.000000e+00> : vector<1x128xf32>
    %157 = tpu.matmul %155, %13, %cst_32 {dimension_numbers = #tpu.dot_dimension_numbers<[1], [0], [0], [1], [0, 0, 1, 1], [], []>} : vector<1x32xf32>, vector<32x128xf32>, vector<1x128xf32> -> vector<1x128xf32>
    %158 = arith.addf %156, %157 : vector<1x128xf32>
    %159 = vector.extract_strided_slice %158 {offsets = [0, 0], sizes = [1, 32], strides = [1, 1]} : vector<1x128xf32> to vector<1x32xf32>
    %160 = arith.negf %159 : vector<1x32xf32>
    %161 = math.exp %160 : vector<1x32xf32>
    %cst_33 = arith.constant 1.000000e+00 : f32
    %162 = vector.broadcast %cst_33 : f32 to vector<1x32xf32>
    %163 = arith.addf %162, %161 : vector<1x32xf32>
    %164 = arith.divf %162, %163 : vector<1x32xf32>
    %165 = vector.extract_strided_slice %158 {offsets = [0, 32], sizes = [1, 32], strides = [1, 1]} : vector<1x128xf32> to vector<1x32xf32>
    %166 = arith.negf %165 : vector<1x32xf32>
    %167 = math.exp %166 : vector<1x32xf32>
    %cst_34 = arith.constant 1.000000e+00 : f32
    %168 = vector.broadcast %cst_34 : f32 to vector<1x32xf32>
    %169 = arith.addf %168, %167 : vector<1x32xf32>
    %170 = arith.divf %168, %169 : vector<1x32xf32>
    %171 = vector.extract_strided_slice %158 {offsets = [0, 64], sizes = [1, 32], strides = [1, 1]} : vector<1x128xf32> to vector<1x32xf32>
    %172 = math.tanh %171 : vector<1x32xf32>
    %173 = vector.extract_strided_slice %158 {offsets = [0, 96], sizes = [1, 32], strides = [1, 1]} : vector<1x128xf32> to vector<1x32xf32>
    %174 = arith.negf %173 : vector<1x32xf32>
    %175 = math.exp %174 : vector<1x32xf32>
    %cst_35 = arith.constant 1.000000e+00 : f32
    %176 = vector.broadcast %cst_35 : f32 to vector<1x32xf32>
    %177 = arith.addf %176, %175 : vector<1x32xf32>
    %178 = arith.divf %176, %177 : vector<1x32xf32>
    %179 = arith.mulf %170, %153 : vector<1x32xf32>
    %180 = arith.mulf %164, %172 : vector<1x32xf32>
    %181 = arith.addf %179, %180 : vector<1x32xf32>
    %182 = math.tanh %181 : vector<1x32xf32>
    %183 = arith.mulf %178, %182 : vector<1x32xf32>
    %184 = vector.extract_strided_slice %12 {offsets = [6, 0], sizes = [1, 128], strides = [1, 1]} : vector<8x128xf32> to vector<1x128xf32>
    %cst_36 = arith.constant dense<0.000000e+00> : vector<1x128xf32>
    %185 = tpu.matmul %183, %13, %cst_36 {dimension_numbers = #tpu.dot_dimension_numbers<[1], [0], [0], [1], [0, 0, 1, 1], [], []>} : vector<1x32xf32>, vector<32x128xf32>, vector<1x128xf32> -> vector<1x128xf32>
    %186 = arith.addf %184, %185 : vector<1x128xf32>
    %187 = vector.extract_strided_slice %186 {offsets = [0, 0], sizes = [1, 32], strides = [1, 1]} : vector<1x128xf32> to vector<1x32xf32>
    %188 = arith.negf %187 : vector<1x32xf32>
    %189 = math.exp %188 : vector<1x32xf32>
    %cst_37 = arith.constant 1.000000e+00 : f32
    %190 = vector.broadcast %cst_37 : f32 to vector<1x32xf32>
    %191 = arith.addf %190, %189 : vector<1x32xf32>
    %192 = arith.divf %190, %191 : vector<1x32xf32>
    %193 = vector.extract_strided_slice %186 {offsets = [0, 32], sizes = [1, 32], strides = [1, 1]} : vector<1x128xf32> to vector<1x32xf32>
    %194 = arith.negf %193 : vector<1x32xf32>
    %195 = math.exp %194 : vector<1x32xf32>
    %cst_38 = arith.constant 1.000000e+00 : f32
    %196 = vector.broadcast %cst_38 : f32 to vector<1x32xf32>
    %197 = arith.addf %196, %195 : vector<1x32xf32>
    %198 = arith.divf %196, %197 : vector<1x32xf32>
    %199 = vector.extract_strided_slice %186 {offsets = [0, 64], sizes = [1, 32], strides = [1, 1]} : vector<1x128xf32> to vector<1x32xf32>
    %200 = math.tanh %199 : vector<1x32xf32>
    %201 = vector.extract_strided_slice %186 {offsets = [0, 96], sizes = [1, 32], strides = [1, 1]} : vector<1x128xf32> to vector<1x32xf32>
    %202 = arith.negf %201 : vector<1x32xf32>
    %203 = math.exp %202 : vector<1x32xf32>
    %cst_39 = arith.constant 1.000000e+00 : f32
    %204 = vector.broadcast %cst_39 : f32 to vector<1x32xf32>
    %205 = arith.addf %204, %203 : vector<1x32xf32>
    %206 = arith.divf %204, %205 : vector<1x32xf32>
    %207 = arith.mulf %198, %181 : vector<1x32xf32>
    %208 = arith.mulf %192, %200 : vector<1x32xf32>
    %209 = arith.addf %207, %208 : vector<1x32xf32>
    %210 = math.tanh %209 : vector<1x32xf32>
    %211 = arith.mulf %206, %210 : vector<1x32xf32>
    %212 = vector.extract_strided_slice %12 {offsets = [7, 0], sizes = [1, 128], strides = [1, 1]} : vector<8x128xf32> to vector<1x128xf32>
    %cst_40 = arith.constant dense<0.000000e+00> : vector<1x128xf32>
    %213 = tpu.matmul %211, %13, %cst_40 {dimension_numbers = #tpu.dot_dimension_numbers<[1], [0], [0], [1], [0, 0, 1, 1], [], []>} : vector<1x32xf32>, vector<32x128xf32>, vector<1x128xf32> -> vector<1x128xf32>
    %214 = arith.addf %212, %213 : vector<1x128xf32>
    %215 = vector.extract_strided_slice %214 {offsets = [0, 0], sizes = [1, 32], strides = [1, 1]} : vector<1x128xf32> to vector<1x32xf32>
    %216 = arith.negf %215 : vector<1x32xf32>
    %217 = math.exp %216 : vector<1x32xf32>
    %cst_41 = arith.constant 1.000000e+00 : f32
    %218 = vector.broadcast %cst_41 : f32 to vector<1x32xf32>
    %219 = arith.addf %218, %217 : vector<1x32xf32>
    %220 = arith.divf %218, %219 : vector<1x32xf32>
    %221 = vector.extract_strided_slice %214 {offsets = [0, 32], sizes = [1, 32], strides = [1, 1]} : vector<1x128xf32> to vector<1x32xf32>
    %222 = arith.negf %221 : vector<1x32xf32>
    %223 = math.exp %222 : vector<1x32xf32>
    %cst_42 = arith.constant 1.000000e+00 : f32
    %224 = vector.broadcast %cst_42 : f32 to vector<1x32xf32>
    %225 = arith.addf %224, %223 : vector<1x32xf32>
    %226 = arith.divf %224, %225 : vector<1x32xf32>
    %227 = vector.extract_strided_slice %214 {offsets = [0, 64], sizes = [1, 32], strides = [1, 1]} : vector<1x128xf32> to vector<1x32xf32>
    %228 = math.tanh %227 : vector<1x32xf32>
    %229 = vector.extract_strided_slice %214 {offsets = [0, 96], sizes = [1, 32], strides = [1, 1]} : vector<1x128xf32> to vector<1x32xf32>
    %230 = arith.negf %229 : vector<1x32xf32>
    %231 = math.exp %230 : vector<1x32xf32>
    %cst_43 = arith.constant 1.000000e+00 : f32
    %232 = vector.broadcast %cst_43 : f32 to vector<1x32xf32>
    %233 = arith.addf %232, %231 : vector<1x32xf32>
    %234 = arith.divf %232, %233 : vector<1x32xf32>
    %235 = arith.mulf %226, %209 : vector<1x32xf32>
    %236 = arith.mulf %220, %228 : vector<1x32xf32>
    %237 = arith.addf %235, %236 : vector<1x32xf32>
    %238 = math.tanh %237 : vector<1x32xf32>
    %239 = arith.mulf %234, %238 : vector<1x32xf32>
    %c0_44 = arith.constant 0 : index
    %c0_45 = arith.constant 0 : index
    %240 = vector.load %arg6[%c0_44, %c0_45] : memref<32x128xf32, #tpu.memory_space<vmem>>, vector<32x128xf32>
    %cst_46 = arith.constant dense<0.000000e+00> : vector<1x128xf32>
    %241 = tpu.matmul %239, %240, %cst_46 {dimension_numbers = #tpu.dot_dimension_numbers<[1], [0], [0], [1], [0, 0, 1, 1], [], []>} : vector<1x32xf32>, vector<32x128xf32>, vector<1x128xf32> -> vector<1x128xf32>
    %c0_47 = arith.constant 0 : index
    %c0_48 = arith.constant 0 : index
    %242 = vector.load %arg8[%c0_47, %c0_48] : memref<1x128xf32, #tpu.memory_space<vmem>>, vector<1x128xf32>
    %243 = arith.addf %241, %242 : vector<1x128xf32>
    %c0_49 = arith.constant 0 : index
    %c0_50 = arith.constant 0 : index
    %244 = vector.load %arg9[%c0_49, %c0_50] : memref<1x32xf32, #tpu.memory_space<vmem>>, vector<1x32xf32>
    %c0_51 = arith.constant 0 : index
    %c0_52 = arith.constant 0 : index
    %245 = vector.load %arg10[%c0_51, %c0_52] : memref<1x32xf32, #tpu.memory_space<vmem>>, vector<1x32xf32>
    %c0_53 = arith.constant 0 : index
    %c0_54 = arith.constant 0 : index
    %246 = vector.load %arg7[%c0_53, %c0_54] : memref<32x128xf32, #tpu.memory_space<vmem>>, vector<32x128xf32>
    %cst_55 = arith.constant dense<0.000000e+00> : vector<1x128xf32>
    %247 = tpu.matmul %244, %246, %cst_55 {dimension_numbers = #tpu.dot_dimension_numbers<[1], [0], [0], [1], [0, 0, 1, 1], [], []>} : vector<1x32xf32>, vector<32x128xf32>, vector<1x128xf32> -> vector<1x128xf32>
    %248 = arith.addf %243, %247 : vector<1x128xf32>
    %249 = vector.extract_strided_slice %248 {offsets = [0, 0], sizes = [1, 32], strides = [1, 1]} : vector<1x128xf32> to vector<1x32xf32>
    %250 = arith.negf %249 : vector<1x32xf32>
    %251 = math.exp %250 : vector<1x32xf32>
    %cst_56 = arith.constant 1.000000e+00 : f32
    %252 = vector.broadcast %cst_56 : f32 to vector<1x32xf32>
    %253 = arith.addf %252, %251 : vector<1x32xf32>
    %254 = arith.divf %252, %253 : vector<1x32xf32>
    %255 = vector.extract_strided_slice %248 {offsets = [0, 32], sizes = [1, 32], strides = [1, 1]} : vector<1x128xf32> to vector<1x32xf32>
    %256 = arith.negf %255 : vector<1x32xf32>
    %257 = math.exp %256 : vector<1x32xf32>
    %cst_57 = arith.constant 1.000000e+00 : f32
    %258 = vector.broadcast %cst_57 : f32 to vector<1x32xf32>
    %259 = arith.addf %258, %257 : vector<1x32xf32>
    %260 = arith.divf %258, %259 : vector<1x32xf32>
    %261 = vector.extract_strided_slice %248 {offsets = [0, 64], sizes = [1, 32], strides = [1, 1]} : vector<1x128xf32> to vector<1x32xf32>
    %262 = math.tanh %261 : vector<1x32xf32>
    %263 = vector.extract_strided_slice %248 {offsets = [0, 96], sizes = [1, 32], strides = [1, 1]} : vector<1x128xf32> to vector<1x32xf32>
    %264 = arith.negf %263 : vector<1x32xf32>
    %265 = math.exp %264 : vector<1x32xf32>
    %cst_58 = arith.constant 1.000000e+00 : f32
    %266 = vector.broadcast %cst_58 : f32 to vector<1x32xf32>
    %267 = arith.addf %266, %265 : vector<1x32xf32>
    %268 = arith.divf %266, %267 : vector<1x32xf32>
    %269 = arith.mulf %260, %245 : vector<1x32xf32>
    %270 = arith.mulf %254, %262 : vector<1x32xf32>
    %271 = arith.addf %269, %270 : vector<1x32xf32>
    %272 = math.tanh %271 : vector<1x32xf32>
    %273 = arith.mulf %268, %272 : vector<1x32xf32>
    %c0_59 = arith.constant 0 : index
    %c0_60 = arith.constant 0 : index
    %274 = vector.load %arg1[%c0_59, %c0_60] : memref<30x1xi32, #tpu.memory_space<vmem>>, vector<30x1xi32>
    %275 = tpu.iota {dimensions = array<i32: 1>} : vector<30x50xi32>
    %276 = vector.broadcast %274 : vector<30x1xi32> to vector<30x50xi32>
    %277 = arith.cmpi eq, %275, %276 : vector<30x50xi32>
    %278 = arith.extui %277 : vector<30x50xi1> to vector<30x50xi32>
    %279 = arith.sitofp %278 : vector<30x50xi32> to vector<30x50xf32>
    %cst_61 = arith.constant dense<0.000000e+00> : vector<30x32xf32>
    %280 = tpu.matmul %279, %0, %cst_61 {dimension_numbers = #tpu.dot_dimension_numbers<[1], [0], [0], [1], [0, 0, 1, 1], [], []>} : vector<30x50xf32>, vector<50x32xf32>, vector<30x32xf32> -> vector<30x32xf32>
    %c0_62 = arith.constant 0 : index
    %c0_63 = arith.constant 0 : index
    %281 = vector.load %arg11[%c0_62, %c0_63] : memref<32x128xf32, #tpu.memory_space<vmem>>, vector<32x128xf32>
    %cst_64 = arith.constant dense<0.000000e+00> : vector<30x128xf32>
    %282 = tpu.matmul %280, %281, %cst_64 {dimension_numbers = #tpu.dot_dimension_numbers<[1], [0], [0], [1], [0, 0, 1, 1], [], []>} : vector<30x32xf32>, vector<32x128xf32>, vector<30x128xf32> -> vector<30x128xf32>
    %c0_65 = arith.constant 0 : index
    %c0_66 = arith.constant 0 : index
    %283 = vector.load %arg13[%c0_65, %c0_66] : memref<1x128xf32, #tpu.memory_space<vmem>>, vector<1x128xf32>
    %284 = vector.broadcast %283 : vector<1x128xf32> to vector<30x128xf32>
    %285 = arith.addf %282, %284 : vector<30x128xf32>
    %c0_67 = arith.constant 0 : index
    %c0_68 = arith.constant 0 : index
    %286 = vector.load %arg12[%c0_67, %c0_68] : memref<32x128xf32, #tpu.memory_space<vmem>>, vector<32x128xf32>
    %cst_69 = arith.constant 0.000000e+00 : f32
    %287 = vector.broadcast %cst_69 : f32 to vector<5x32xf32>
    %cst_70 = arith.constant 0.000000e+00 : f32
    %288 = vector.broadcast %cst_70 : f32 to vector<5x32xf32>
    %289 = vector.extract_strided_slice %285 {offsets = [0, 0], sizes = [5, 128], strides = [1, 1]} : vector<30x128xf32> to vector<5x128xf32>
    %cst_71 = arith.constant dense<0.000000e+00> : vector<5x128xf32>
    %290 = tpu.matmul %287, %286, %cst_71 {dimension_numbers = #tpu.dot_dimension_numbers<[1], [0], [0], [1], [0, 0, 1, 1], [], []>} : vector<5x32xf32>, vector<32x128xf32>, vector<5x128xf32> -> vector<5x128xf32>
    %291 = arith.addf %289, %290 : vector<5x128xf32>
    %292 = vector.extract_strided_slice %291 {offsets = [0, 0], sizes = [5, 32], strides = [1, 1]} : vector<5x128xf32> to vector<5x32xf32>
    %293 = arith.negf %292 : vector<5x32xf32>
    %294 = math.exp %293 : vector<5x32xf32>
    %cst_72 = arith.constant 1.000000e+00 : f32
    %295 = vector.broadcast %cst_72 : f32 to vector<5x32xf32>
    %296 = arith.addf %295, %294 : vector<5x32xf32>
    %297 = arith.divf %295, %296 : vector<5x32xf32>
    %298 = vector.extract_strided_slice %291 {offsets = [0, 32], sizes = [5, 32], strides = [1, 1]} : vector<5x128xf32> to vector<5x32xf32>
    %299 = arith.negf %298 : vector<5x32xf32>
    %300 = math.exp %299 : vector<5x32xf32>
    %cst_73 = arith.constant 1.000000e+00 : f32
    %301 = vector.broadcast %cst_73 : f32 to vector<5x32xf32>
    %302 = arith.addf %301, %300 : vector<5x32xf32>
    %303 = arith.divf %301, %302 : vector<5x32xf32>
    %304 = vector.extract_strided_slice %291 {offsets = [0, 64], sizes = [5, 32], strides = [1, 1]} : vector<5x128xf32> to vector<5x32xf32>
    %305 = math.tanh %304 : vector<5x32xf32>
    %306 = vector.extract_strided_slice %291 {offsets = [0, 96], sizes = [5, 32], strides = [1, 1]} : vector<5x128xf32> to vector<5x32xf32>
    %307 = arith.negf %306 : vector<5x32xf32>
    %308 = math.exp %307 : vector<5x32xf32>
    %cst_74 = arith.constant 1.000000e+00 : f32
    %309 = vector.broadcast %cst_74 : f32 to vector<5x32xf32>
    %310 = arith.addf %309, %308 : vector<5x32xf32>
    %311 = arith.divf %309, %310 : vector<5x32xf32>
    %312 = arith.mulf %303, %288 : vector<5x32xf32>
    %313 = arith.mulf %297, %305 : vector<5x32xf32>
    %314 = arith.addf %312, %313 : vector<5x32xf32>
    %315 = math.tanh %314 : vector<5x32xf32>
    %316 = arith.mulf %311, %315 : vector<5x32xf32>
    %317 = vector.extract_strided_slice %285 {offsets = [5, 0], sizes = [5, 128], strides = [1, 1]} : vector<30x128xf32> to vector<5x128xf32>
    %cst_75 = arith.constant dense<0.000000e+00> : vector<5x128xf32>
    %318 = tpu.matmul %316, %286, %cst_75 {dimension_numbers = #tpu.dot_dimension_numbers<[1], [0], [0], [1], [0, 0, 1, 1], [], []>} : vector<5x32xf32>, vector<32x128xf32>, vector<5x128xf32> -> vector<5x128xf32>
    %319 = arith.addf %317, %318 : vector<5x128xf32>
    %320 = vector.extract_strided_slice %319 {offsets = [0, 0], sizes = [5, 32], strides = [1, 1]} : vector<5x128xf32> to vector<5x32xf32>
    %321 = arith.negf %320 : vector<5x32xf32>
    %322 = math.exp %321 : vector<5x32xf32>
    %cst_76 = arith.constant 1.000000e+00 : f32
    %323 = vector.broadcast %cst_76 : f32 to vector<5x32xf32>
    %324 = arith.addf %323, %322 : vector<5x32xf32>
    %325 = arith.divf %323, %324 : vector<5x32xf32>
    %326 = vector.extract_strided_slice %319 {offsets = [0, 32], sizes = [5, 32], strides = [1, 1]} : vector<5x128xf32> to vector<5x32xf32>
    %327 = arith.negf %326 : vector<5x32xf32>
    %328 = math.exp %327 : vector<5x32xf32>
    %cst_77 = arith.constant 1.000000e+00 : f32
    %329 = vector.broadcast %cst_77 : f32 to vector<5x32xf32>
    %330 = arith.addf %329, %328 : vector<5x32xf32>
    %331 = arith.divf %329, %330 : vector<5x32xf32>
    %332 = vector.extract_strided_slice %319 {offsets = [0, 64], sizes = [5, 32], strides = [1, 1]} : vector<5x128xf32> to vector<5x32xf32>
    %333 = math.tanh %332 : vector<5x32xf32>
    %334 = vector.extract_strided_slice %319 {offsets = [0, 96], sizes = [5, 32], strides = [1, 1]} : vector<5x128xf32> to vector<5x32xf32>
    %335 = arith.negf %334 : vector<5x32xf32>
    %336 = math.exp %335 : vector<5x32xf32>
    %cst_78 = arith.constant 1.000000e+00 : f32
    %337 = vector.broadcast %cst_78 : f32 to vector<5x32xf32>
    %338 = arith.addf %337, %336 : vector<5x32xf32>
    %339 = arith.divf %337, %338 : vector<5x32xf32>
    %340 = arith.mulf %331, %314 : vector<5x32xf32>
    %341 = arith.mulf %325, %333 : vector<5x32xf32>
    %342 = arith.addf %340, %341 : vector<5x32xf32>
    %343 = math.tanh %342 : vector<5x32xf32>
    %344 = arith.mulf %339, %343 : vector<5x32xf32>
    %345 = vector.extract_strided_slice %285 {offsets = [10, 0], sizes = [5, 128], strides = [1, 1]} : vector<30x128xf32> to vector<5x128xf32>
    %cst_79 = arith.constant dense<0.000000e+00> : vector<5x128xf32>
    %346 = tpu.matmul %344, %286, %cst_79 {dimension_numbers = #tpu.dot_dimension_numbers<[1], [0], [0], [1], [0, 0, 1, 1], [], []>} : vector<5x32xf32>, vector<32x128xf32>, vector<5x128xf32> -> vector<5x128xf32>
    %347 = arith.addf %345, %346 : vector<5x128xf32>
    %348 = vector.extract_strided_slice %347 {offsets = [0, 0], sizes = [5, 32], strides = [1, 1]} : vector<5x128xf32> to vector<5x32xf32>
    %349 = arith.negf %348 : vector<5x32xf32>
    %350 = math.exp %349 : vector<5x32xf32>
    %cst_80 = arith.constant 1.000000e+00 : f32
    %351 = vector.broadcast %cst_80 : f32 to vector<5x32xf32>
    %352 = arith.addf %351, %350 : vector<5x32xf32>
    %353 = arith.divf %351, %352 : vector<5x32xf32>
    %354 = vector.extract_strided_slice %347 {offsets = [0, 32], sizes = [5, 32], strides = [1, 1]} : vector<5x128xf32> to vector<5x32xf32>
    %355 = arith.negf %354 : vector<5x32xf32>
    %356 = math.exp %355 : vector<5x32xf32>
    %cst_81 = arith.constant 1.000000e+00 : f32
    %357 = vector.broadcast %cst_81 : f32 to vector<5x32xf32>
    %358 = arith.addf %357, %356 : vector<5x32xf32>
    %359 = arith.divf %357, %358 : vector<5x32xf32>
    %360 = vector.extract_strided_slice %347 {offsets = [0, 64], sizes = [5, 32], strides = [1, 1]} : vector<5x128xf32> to vector<5x32xf32>
    %361 = math.tanh %360 : vector<5x32xf32>
    %362 = vector.extract_strided_slice %347 {offsets = [0, 96], sizes = [5, 32], strides = [1, 1]} : vector<5x128xf32> to vector<5x32xf32>
    %363 = arith.negf %362 : vector<5x32xf32>
    %364 = math.exp %363 : vector<5x32xf32>
    %cst_82 = arith.constant 1.000000e+00 : f32
    %365 = vector.broadcast %cst_82 : f32 to vector<5x32xf32>
    %366 = arith.addf %365, %364 : vector<5x32xf32>
    %367 = arith.divf %365, %366 : vector<5x32xf32>
    %368 = arith.mulf %359, %342 : vector<5x32xf32>
    %369 = arith.mulf %353, %361 : vector<5x32xf32>
    %370 = arith.addf %368, %369 : vector<5x32xf32>
    %371 = math.tanh %370 : vector<5x32xf32>
    %372 = arith.mulf %367, %371 : vector<5x32xf32>
    %373 = vector.extract_strided_slice %285 {offsets = [15, 0], sizes = [5, 128], strides = [1, 1]} : vector<30x128xf32> to vector<5x128xf32>
    %cst_83 = arith.constant dense<0.000000e+00> : vector<5x128xf32>
    %374 = tpu.matmul %372, %286, %cst_83 {dimension_numbers = #tpu.dot_dimension_numbers<[1], [0], [0], [1], [0, 0, 1, 1], [], []>} : vector<5x32xf32>, vector<32x128xf32>, vector<5x128xf32> -> vector<5x128xf32>
    %375 = arith.addf %373, %374 : vector<5x128xf32>
    %376 = vector.extract_strided_slice %375 {offsets = [0, 0], sizes = [5, 32], strides = [1, 1]} : vector<5x128xf32> to vector<5x32xf32>
    %377 = arith.negf %376 : vector<5x32xf32>
    %378 = math.exp %377 : vector<5x32xf32>
    %cst_84 = arith.constant 1.000000e+00 : f32
    %379 = vector.broadcast %cst_84 : f32 to vector<5x32xf32>
    %380 = arith.addf %379, %378 : vector<5x32xf32>
    %381 = arith.divf %379, %380 : vector<5x32xf32>
    %382 = vector.extract_strided_slice %375 {offsets = [0, 32], sizes = [5, 32], strides = [1, 1]} : vector<5x128xf32> to vector<5x32xf32>
    %383 = arith.negf %382 : vector<5x32xf32>
    %384 = math.exp %383 : vector<5x32xf32>
    %cst_85 = arith.constant 1.000000e+00 : f32
    %385 = vector.broadcast %cst_85 : f32 to vector<5x32xf32>
    %386 = arith.addf %385, %384 : vector<5x32xf32>
    %387 = arith.divf %385, %386 : vector<5x32xf32>
    %388 = vector.extract_strided_slice %375 {offsets = [0, 64], sizes = [5, 32], strides = [1, 1]} : vector<5x128xf32> to vector<5x32xf32>
    %389 = math.tanh %388 : vector<5x32xf32>
    %390 = vector.extract_strided_slice %375 {offsets = [0, 96], sizes = [5, 32], strides = [1, 1]} : vector<5x128xf32> to vector<5x32xf32>
    %391 = arith.negf %390 : vector<5x32xf32>
    %392 = math.exp %391 : vector<5x32xf32>
    %cst_86 = arith.constant 1.000000e+00 : f32
    %393 = vector.broadcast %cst_86 : f32 to vector<5x32xf32>
    %394 = arith.addf %393, %392 : vector<5x32xf32>
    %395 = arith.divf %393, %394 : vector<5x32xf32>
    %396 = arith.mulf %387, %370 : vector<5x32xf32>
    %397 = arith.mulf %381, %389 : vector<5x32xf32>
    %398 = arith.addf %396, %397 : vector<5x32xf32>
    %399 = math.tanh %398 : vector<5x32xf32>
    %400 = arith.mulf %395, %399 : vector<5x32xf32>
    %401 = vector.extract_strided_slice %285 {offsets = [20, 0], sizes = [5, 128], strides = [1, 1]} : vector<30x128xf32> to vector<5x128xf32>
    %cst_87 = arith.constant dense<0.000000e+00> : vector<5x128xf32>
    %402 = tpu.matmul %400, %286, %cst_87 {dimension_numbers = #tpu.dot_dimension_numbers<[1], [0], [0], [1], [0, 0, 1, 1], [], []>} : vector<5x32xf32>, vector<32x128xf32>, vector<5x128xf32> -> vector<5x128xf32>
    %403 = arith.addf %401, %402 : vector<5x128xf32>
    %404 = vector.extract_strided_slice %403 {offsets = [0, 0], sizes = [5, 32], strides = [1, 1]} : vector<5x128xf32> to vector<5x32xf32>
    %405 = arith.negf %404 : vector<5x32xf32>
    %406 = math.exp %405 : vector<5x32xf32>
    %cst_88 = arith.constant 1.000000e+00 : f32
    %407 = vector.broadcast %cst_88 : f32 to vector<5x32xf32>
    %408 = arith.addf %407, %406 : vector<5x32xf32>
    %409 = arith.divf %407, %408 : vector<5x32xf32>
    %410 = vector.extract_strided_slice %403 {offsets = [0, 32], sizes = [5, 32], strides = [1, 1]} : vector<5x128xf32> to vector<5x32xf32>
    %411 = arith.negf %410 : vector<5x32xf32>
    %412 = math.exp %411 : vector<5x32xf32>
    %cst_89 = arith.constant 1.000000e+00 : f32
    %413 = vector.broadcast %cst_89 : f32 to vector<5x32xf32>
    %414 = arith.addf %413, %412 : vector<5x32xf32>
    %415 = arith.divf %413, %414 : vector<5x32xf32>
    %416 = vector.extract_strided_slice %403 {offsets = [0, 64], sizes = [5, 32], strides = [1, 1]} : vector<5x128xf32> to vector<5x32xf32>
    %417 = math.tanh %416 : vector<5x32xf32>
    %418 = vector.extract_strided_slice %403 {offsets = [0, 96], sizes = [5, 32], strides = [1, 1]} : vector<5x128xf32> to vector<5x32xf32>
    %419 = arith.negf %418 : vector<5x32xf32>
    %420 = math.exp %419 : vector<5x32xf32>
    %cst_90 = arith.constant 1.000000e+00 : f32
    %421 = vector.broadcast %cst_90 : f32 to vector<5x32xf32>
    %422 = arith.addf %421, %420 : vector<5x32xf32>
    %423 = arith.divf %421, %422 : vector<5x32xf32>
    %424 = arith.mulf %415, %398 : vector<5x32xf32>
    %425 = arith.mulf %409, %417 : vector<5x32xf32>
    %426 = arith.addf %424, %425 : vector<5x32xf32>
    %427 = math.tanh %426 : vector<5x32xf32>
    %428 = arith.mulf %423, %427 : vector<5x32xf32>
    %429 = vector.extract_strided_slice %285 {offsets = [25, 0], sizes = [5, 128], strides = [1, 1]} : vector<30x128xf32> to vector<5x128xf32>
    %cst_91 = arith.constant dense<0.000000e+00> : vector<5x128xf32>
    %430 = tpu.matmul %428, %286, %cst_91 {dimension_numbers = #tpu.dot_dimension_numbers<[1], [0], [0], [1], [0, 0, 1, 1], [], []>} : vector<5x32xf32>, vector<32x128xf32>, vector<5x128xf32> -> vector<5x128xf32>
    %431 = arith.addf %429, %430 : vector<5x128xf32>
    %432 = vector.extract_strided_slice %431 {offsets = [0, 0], sizes = [5, 32], strides = [1, 1]} : vector<5x128xf32> to vector<5x32xf32>
    %433 = arith.negf %432 : vector<5x32xf32>
    %434 = math.exp %433 : vector<5x32xf32>
    %cst_92 = arith.constant 1.000000e+00 : f32
    %435 = vector.broadcast %cst_92 : f32 to vector<5x32xf32>
    %436 = arith.addf %435, %434 : vector<5x32xf32>
    %437 = arith.divf %435, %436 : vector<5x32xf32>
    %438 = vector.extract_strided_slice %431 {offsets = [0, 32], sizes = [5, 32], strides = [1, 1]} : vector<5x128xf32> to vector<5x32xf32>
    %439 = arith.negf %438 : vector<5x32xf32>
    %440 = math.exp %439 : vector<5x32xf32>
    %cst_93 = arith.constant 1.000000e+00 : f32
    %441 = vector.broadcast %cst_93 : f32 to vector<5x32xf32>
    %442 = arith.addf %441, %440 : vector<5x32xf32>
    %443 = arith.divf %441, %442 : vector<5x32xf32>
    %444 = vector.extract_strided_slice %431 {offsets = [0, 64], sizes = [5, 32], strides = [1, 1]} : vector<5x128xf32> to vector<5x32xf32>
    %445 = math.tanh %444 : vector<5x32xf32>
    %446 = vector.extract_strided_slice %431 {offsets = [0, 96], sizes = [5, 32], strides = [1, 1]} : vector<5x128xf32> to vector<5x32xf32>
    %447 = arith.negf %446 : vector<5x32xf32>
    %448 = math.exp %447 : vector<5x32xf32>
    %cst_94 = arith.constant 1.000000e+00 : f32
    %449 = vector.broadcast %cst_94 : f32 to vector<5x32xf32>
    %450 = arith.addf %449, %448 : vector<5x32xf32>
    %451 = arith.divf %449, %450 : vector<5x32xf32>
    %452 = arith.mulf %443, %426 : vector<5x32xf32>
    %453 = arith.mulf %437, %445 : vector<5x32xf32>
    %454 = arith.addf %452, %453 : vector<5x32xf32>
    %455 = math.tanh %454 : vector<5x32xf32>
    %456 = arith.mulf %451, %455 : vector<5x32xf32>
    %c0_95 = arith.constant 0 : index
    %c0_96 = arith.constant 0 : index
    %457 = vector.load %arg14[%c0_95, %c0_96] : memref<1x64xf32, #tpu.memory_space<vmem>>, vector<1x64xf32>
    %458 = vector.extract_strided_slice %457 {offsets = [0, 0], sizes = [1, 32], strides = [1, 1]} : vector<1x64xf32> to vector<1x32xf32>
    %459 = arith.mulf %273, %458 : vector<1x32xf32>
    %cst_97 = arith.constant dense<0.000000e+00> : vector<1xf32>
    %460 = vector.multi_reduction <add>, %459, %cst_97 [1] : vector<1x32xf32> to vector<1xf32>
    %461 = vector.shape_cast %460 : vector<1xf32> to vector<1x1xf32>
    %462 = vector.extract_strided_slice %457 {offsets = [0, 32], sizes = [1, 32], strides = [1, 1]} : vector<1x64xf32> to vector<1x32xf32>
    %463 = vector.broadcast %462 : vector<1x32xf32> to vector<5x32xf32>
    %464 = arith.mulf %456, %463 : vector<5x32xf32>
    %cst_98 = arith.constant dense<0.000000e+00> : vector<5xf32>
    %465 = vector.multi_reduction <add>, %464, %cst_98 [1] : vector<5x32xf32> to vector<5xf32>
    %466 = vector.shape_cast %465 : vector<5xf32> to vector<5x1xf32>
    %467 = vector.broadcast %461 : vector<1x1xf32> to vector<5x1xf32>
    %468 = arith.addf %466, %467 : vector<5x1xf32>
    %c0_99 = arith.constant 0 : index
    %c0_100 = arith.constant 0 : index
    %469 = vector.load %arg15[%c0_99, %c0_100] : memref<1x1xf32, #tpu.memory_space<vmem>>, vector<1x1xf32>
    %470 = vector.broadcast %469 : vector<1x1xf32> to vector<5x1xf32>
    %471 = arith.addf %468, %470 : vector<5x1xf32>
    %cst_101 = arith.constant 0.000000e+00 : f32
    %472 = vector.broadcast %cst_101 : f32 to vector<5x1xf32>
    %473 = arith.maximumf %471, %472 : vector<5x1xf32>
    %c0_102 = arith.constant 0 : index
    %c0_103 = arith.constant 0 : index
    %474 = vector.load %arg16[%c0_102, %c0_103] : memref<5x1xf32, #tpu.memory_space<vmem>>, vector<5x1xf32>
    tpu.vector_store %arg16[%c0_102, %c0_103], %473 {strides = array<i32>} : memref<5x1xf32, #tpu.memory_space<vmem>>, vector<5x1xf32>,
    return
  }
}

</mosaic_0001>

<llo_original>
// kernel: lstm_dqn_forward.1
$region0: #{lstm_dqn_forward.1}
  #allocation0 [shape = 'u32[]', space=smem, size = 0x4, offset = 0x4, fixed_abs, tag = 'smem constant byte address 0x4 - core index']
  #allocation1 [shape = 'u32[72,128]{1,0:T(1,128)}', space=vmem, size = 0x9000, scoped, tag = 'internal scratch']
  #allocation2 [shape = 'f32[1,1]{1,0:T(1,128)S(1)}', space=vmem, size = 0x200, scoped, tag = 'scoped memory for lstm_dqn_forward.1']
  %s0 = inlined_call_operand.vmem [shape: s32[8,1], index: 0, kind: input, shape index: {}]
  %s1 = inlined_call_operand.vmem [shape: s32[30,1], index: 1, kind: input, shape index: {}]
  %s2 = inlined_call_operand.vmem [shape: f32[50,32], index: 2, kind: input, shape index: {}]
  %s3 = inlined_call_operand.vmem [shape: f32[32,128], index: 3, kind: input, shape index: {}]
  %s4 = inlined_call_operand.vmem [shape: f32[32,128], index: 4, kind: input, shape index: {}]
  %s5 = inlined_call_operand.vmem [shape: f32[1,128], index: 5, kind: input, shape index: {}]
  %s6 = inlined_call_operand.vmem [shape: f32[32,128], index: 6, kind: input, shape index: {}]
  %s7 = inlined_call_operand.hbm [shape: f32[32,128], index: 7, kind: input, shape index: {}]
  %s8 = inlined_call_operand.vmem [shape: f32[1,128], index: 8, kind: input, shape index: {}]
  %s9 = inlined_call_operand.vmem [shape: f32[1,32], index: 9, kind: input, shape index: {}, may-alias: {9,10}]
  %s10 = inlined_call_operand.vmem [shape: f32[1,32], index: 10, kind: input, shape index: {}, may-alias: {9,10}]
  %s11 = inlined_call_operand.hbm [shape: f32[32,128], index: 11, kind: input, shape index: {}]
  %s12 = inlined_call_operand.hbm [shape: f32[32,128], index: 12, kind: input, shape index: {}]
  %s13 = inlined_call_operand.vmem [shape: f32[1,128], index: 13, kind: input, shape index: {}]
  %s14 = inlined_call_operand.vmem [shape: f32[1,64], index: 14, kind: input, shape index: {}]
  %s15 = inlined_call_operand.<no memory space> [shape: f32[1,1], index: 15, kind: input, shape index: {}]
  %s16 = inlined_call_operand.vmem [shape: f32[5,1], index: 16, kind: output, shape index: {}]
  %s17 = sld [smem:[#allocation0]]
  $region86: #{lstm_dqn_forward.1} parent=0
    _
  %s19 = ssub.s32 1, %s17
  %s20 = scalar_select 0, %s19, %s17
  %v21 = vstv %s15
  %22 = vst [vmem:[#allocation2] sm:$0x1] %v21
  $region1: #{lstm_dqn_forward.1} parent=0
    #allocation3 [shape = 'u8[16384]{0}', space=vmem, size = 0x4000, scoped, tag = 'input window, operand 7, single buffered']
    #allocation4 [shape = 's32[1]{0}', space=sflag, size = 0x4, scoped, tag = 'scoped memory for lstm_dqn_forward.1']
    #allocation5 [shape = 'u8[16384]{0}', space=vmem, size = 0x4000, scoped, tag = 'input window, operand 11, single buffered']
    #allocation6 [shape = 's32[1]{0}', space=sflag, size = 0x4, scoped, tag = 'scoped memory for lstm_dqn_forward.1']
    #allocation7 [shape = 'u8[16384]{0}', space=vmem, size = 0x4000, scoped, tag = 'input window, operand 12, single buffered']
    %23 = vsyncpa [#allocation4], 0
    %24 = vsyncpa [#allocation6], 0
    // Predicated region
    $region2: #{lstm_dqn_forward.1} parent=1 // pred_check
      _
    $region3: #{lstm_dqn_forward.1} parent=1 // pred_check_branch
      %26 = sbr.rel (0) target = $region5
    $region4: #{lstm_dqn_forward.1} parent=1 // pred_region
      _
    $region5: #{lstm_dqn_forward.1} parent=1 // pred_fallthru
      _
    // Predicated region
    $region6: #{lstm_dqn_forward.1} parent=1 // pred_check
      _
    $region7: #{lstm_dqn_forward.1} parent=1 // pred_check_branch
      %28 = sbr.rel (0) target = $region9
    $region8: #{lstm_dqn_forward.1} parent=1 // pred_region
      _
    $region9: #{lstm_dqn_forward.1} parent=1 // pred_fallthru
      _
    // Predicated region
    $region10: #{lstm_dqn_forward.1} parent=1 // pred_check
      _
    $region11: #{lstm_dqn_forward.1} parent=1 // pred_check_branch
      %30 = sbr.rel (0) target = $region13
    $region12: #{lstm_dqn_forward.1} parent=1 // pred_region
      _
    $region13: #{lstm_dqn_forward.1} parent=1 // pred_fallthru
      _
    // Predicated region
    $region14: #{lstm_dqn_forward.1} parent=1 // pred_check
      _
    $region15: #{lstm_dqn_forward.1} parent=1 // pred_check_branch
      %32 = sbr.rel (0) target = $region17
    $region16: #{lstm_dqn_forward.1} parent=1 // pred_region
      _
    $region17: #{lstm_dqn_forward.1} parent=1 // pred_fallthru
      _
    // Predicated region
    $region18: #{lstm_dqn_forward.1} parent=1 // pred_check
      _
    $region19: #{lstm_dqn_forward.1} parent=1 // pred_check_branch
      %34 = sbr.rel (0) target = $region21
    $region20: #{lstm_dqn_forward.1} parent=1 // pred_region
      _
    $region21: #{lstm_dqn_forward.1} parent=1 // pred_fallthru
      _
    // Predicated region
    $region22: #{lstm_dqn_forward.1} parent=1 // pred_check
      _
    $region23: #{lstm_dqn_forward.1} parent=1 // pred_check_branch
      %36 = sbr.rel (0) target = $region25
    $region24: #{lstm_dqn_forward.1} parent=1 // pred_region
      _
    $region25: #{lstm_dqn_forward.1} parent=1 // pred_fallthru
      _
    // Predicated region
    $region26: #{lstm_dqn_forward.1} parent=1 // pred_check
      _
    $region27: #{lstm_dqn_forward.1} parent=1 // pred_check_branch
      %38 = sbr.rel (0) target = $region29
    $region28: #{lstm_dqn_forward.1} parent=1 // pred_region
      _
    $region29: #{lstm_dqn_forward.1} parent=1 // pred_fallthru
      _
    // Predicated region
    $region30: #{lstm_dqn_forward.1} parent=1 // pred_check
      _
    $region31: #{lstm_dqn_forward.1} parent=1 // pred_check_branch
      %40 = sbr.rel (0) target = $region33
    $region32: #{lstm_dqn_forward.1} parent=1 // pred_region
      %42 = vsyncadd [#allocation4], 0
      %s43 = sshll.u32 %s7, 4
      %s44 = int_to_ptr.hbm [resolvable:$true] %s43
      %s45 = sshll.u32 [#allocation3], 4
      %s46 = int_to_ptr.vmem [resolvable:$true] %s45
      %51 = dma.hbm_to_vmem [thread:$0]  %s44, 512, %s46, [#allocation4], 128, 128, 8
    $region33: #{lstm_dqn_forward.1} parent=1 // pred_fallthru
      _
    // Predicated region
    $region34: #{lstm_dqn_forward.1} parent=1 // pred_check
      _
    $region35: #{lstm_dqn_forward.1} parent=1 // pred_check_branch
      %53 = sbr.rel (0) target = $region37
    $region36: #{lstm_dqn_forward.1} parent=1 // pred_region
      _
    $region37: #{lstm_dqn_forward.1} parent=1 // pred_fallthru
      _
    // Predicated region
    $region38: #{lstm_dqn_forward.1} parent=1 // pred_check
      _
    $region39: #{lstm_dqn_forward.1} parent=1 // pred_check_branch
      %55 = sbr.rel (0) target = $region41
    $region40: #{lstm_dqn_forward.1} parent=1 // pred_region
      _
    $region41: #{lstm_dqn_forward.1} parent=1 // pred_fallthru
      _
    // Predicated region
    $region42: #{lstm_dqn_forward.1} parent=1 // pred_check
      _
    $region43: #{lstm_dqn_forward.1} parent=1 // pred_check_branch
      %57 = sbr.rel (0) target = $region45
    $region44: #{lstm_dqn_forward.1} parent=1 // pred_region
      _
    $region45: #{lstm_dqn_forward.1} parent=1 // pred_fallthru
      _
    // Predicated region
    $region46: #{lstm_dqn_forward.1} parent=1 // pred_check
      _
    $region47: #{lstm_dqn_forward.1} parent=1 // pred_check_branch
      %59 = sbr.rel (0) target = $region49
    $region48: #{lstm_dqn_forward.1} parent=1 // pred_region
      %61 = vsyncadd [#allocation6], 0
      %s62 = sshll.u32 %s11, 4
      %s63 = int_to_ptr.hbm [resolvable:$true] %s62
      %s64 = sshll.u32 [#allocation5], 4
      %s65 = int_to_ptr.vmem [resolvable:$true] %s64
      %70 = dma.hbm_to_vmem [thread:$0]  %s63, 512, %s65, [#allocation6], 128, 128, 8
    $region49: #{lstm_dqn_forward.1} parent=1 // pred_fallthru
      _
    // Predicated region
    $region50: #{lstm_dqn_forward.1} parent=1 // pred_check
      _
    $region51: #{lstm_dqn_forward.1} parent=1 // pred_check_branch
      %72 = sbr.rel (0) target = $region53
    $region52: #{lstm_dqn_forward.1} parent=1 // pred_region
      %74 = vsyncadd [#allocation6], 0
      %s75 = sshll.u32 %s12, 4
      %s76 = int_to_ptr.hbm [resolvable:$true] %s75
      %s77 = sshll.u32 [#allocation7], 4
      %s78 = int_to_ptr.vmem [resolvable:$true] %s77
      %83 = dma.hbm_to_vmem [thread:$0]  %s76, 512, %s78, [#allocation6], 128, 128, 8
    $region53: #{lstm_dqn_forward.1} parent=1 // pred_fallthru
      _
    // Predicated region
    $region54: #{lstm_dqn_forward.1} parent=1 // pred_check
      _
    $region55: #{lstm_dqn_forward.1} parent=1 // pred_check_branch
      %85 = sbr.rel (0) target = $region57
    $region56: #{lstm_dqn_forward.1} parent=1 // pred_region
      _
    $region57: #{lstm_dqn_forward.1} parent=1 // pred_fallthru
      _
    // Predicated region
    $region58: #{lstm_dqn_forward.1} parent=1 // pred_check
      _
    $region59: #{lstm_dqn_forward.1} parent=1 // pred_check_branch
      %87 = sbr.rel (0) target = $region61
    $region60: #{lstm_dqn_forward.1} parent=1 // pred_region
      _
    $region61: #{lstm_dqn_forward.1} parent=1 // pred_fallthru
      _
    // Predicated region
    $region62: #{lstm_dqn_forward.1} parent=1 // pred_check
      _
    $region63: #{lstm_dqn_forward.1} parent=1 // pred_check_branch
      %89 = sbr.rel (0) target = $region65
    $region64: #{lstm_dqn_forward.1} parent=1 // pred_region
      _
    $region65: #{lstm_dqn_forward.1} parent=1 // pred_fallthru
      _
    // Predicated region
    $region66: #{lstm_dqn_forward.1} parent=1 // pred_check
      _
    $region67: #{lstm_dqn_forward.1} parent=1 // pred_check_branch
      %91 = sbr.rel (0) target = $region69
    $region68: #{lstm_dqn_forward.1} parent=1 // pred_region
      %93 = dma.done [#allocation4], 512
    $region69: #{lstm_dqn_forward.1} parent=1 // pred_fallthru
      _
    // Predicated region
    $region70: #{lstm_dqn_forward.1} parent=1 // pred_check
      _
    $region71: #{lstm_dqn_forward.1} parent=1 // pred_check_branch
      %95 = sbr.rel (0) target = $region73
    $region72: #{lstm_dqn_forward.1} parent=1 // pred_region
      %97 = dma.done [#allocation6], 512
    $region73: #{lstm_dqn_forward.1} parent=1 // pred_fallthru
      _
    // Predicated region
    $region74: #{lstm_dqn_forward.1} parent=1 // pred_check
      _
    $region75: #{lstm_dqn_forward.1} parent=1 // pred_check_branch
      %99 = sbr.rel (0) target = $region77
    $region76: #{lstm_dqn_forward.1} parent=1 // pred_region
      %101 = dma.done [#allocation6], 512
    $region77: #{lstm_dqn_forward.1} parent=1 // pred_fallthru
      _
    %v102 = vld [vmem:[%s2] sm:$0xff]
    %v103 = vld [vmem:[%s2 + $0x8] sm:$0xff]
    %v104 = vld [vmem:[%s2 + $0x10] sm:$0xff]
    %v105 = vld [vmem:[%s2 + $0x18] sm:$0xff]
    %v106 = vld [vmem:[%s2 + $0x20] sm:$0xff]
    %v107 = vld [vmem:[%s2 + $0x28] sm:$0xff]
    %v108 = vld [vmem:[%s2 + $0x30] sm:$0x3]
    %v109 = vld [vmem:[%s0] sm:$0xff]
    %v110 = vlaneseq
    %v111 = vand.u32 %v110, 127
    %112 = vset.pattern.permute.xlu0 0
    %113 = vperm.xlu0 %112, %v109
    %v114 = vpop.permute.xlu0 %113
    %vm115 = vcmp.eq.s32.totalorder %v111, %v114
    %v116 = vsel %vm115, 1, 0
    %v117 = vcvt.s32.f32 %v116
    %vm118 = vcmask 408576
    %v120 = vsel %vm118, %v117, 0
    %vm122 = vcmask 1041408
    %v124 = vsel %vm122, %v108, 0
    %126 = vmatpush.msra.mxu0 0.0
    %127 = vmatpush.msra.mxu0 0.0
    %128 = vmatpush.msra.mxu0 0.0
    %129 = vmatpush.msra.mxu0 0.0
    %130 = vmatpush.msra.mxu0 0.0
    %131 = vmatpush.msra.mxu0 0.0
    %132 = vmatpush.msra.mxu0 0.0
    %133 = vmatpush.msra.mxu0 0.0
    %134 = vmatpush.msra.mxu0 0.0
    %135 = vmatpush.msra.mxu0 %v124
    %136 = vmatpush.msra.mxu0 %v107
    %137 = vmatpush.msra.mxu0 %v106
    %138 = vmatpush.msra.mxu0 %v105
    %139 = vmatpush.msra.mxu0 %v104
    %140 = vmatpush.msra.mxu0 %v103
    %141 = vmatpush.msra.mxu0 %v102
    %142 = vmatmul.f32.gmra.mxu0 %v120
    %v143 = vpop.f32.mrf.mxu0
    %v144 = vadd.f32 0.0, %v143
    %145 = vdwg.mxu0
    %v146 = vld [vmem:[%s3] sm:$0xff]
    %v147 = vld [vmem:[%s3 + $0x8] sm:$0xff]
    %v148 = vld [vmem:[%s3 + $0x10] sm:$0xff]
    %v149 = vld [vmem:[%s3 + $0x18] sm:$0xff]
    %v150 = vld [vmem:[%s5] sm:$0x1]
    %v152 = vperm.slane %v150, 0
    %vm154 = vcmask 261120
    %v156 = vsel %vm154, %v144, 0
    %158 = vmatpush.msra.mxu0 0.0
    %159 = vmatpush.msra.mxu0 0.0
    %160 = vmatpush.msra.mxu0 0.0
    %161 = vmatpush.msra.mxu0 0.0
    %162 = vmatpush.msra.mxu0 0.0
    %163 = vmatpush.msra.mxu0 0.0
    %164 = vmatpush.msra.mxu0 0.0
    %165 = vmatpush.msra.mxu0 0.0
    %166 = vmatpush.msra.mxu0 0.0
    %167 = vmatpush.msra.mxu0 0.0
    %168 = vmatpush.msra.mxu0 0.0
    %169 = vmatpush.msra.mxu0 0.0
    %170 = vmatpush.msra.mxu0 %v149
    %171 = vmatpush.msra.mxu0 %v148
    %172 = vmatpush.msra.mxu0 %v147
    %173 = vmatpush.msra.mxu0 %v146
    %174 = vmatmul.f32.gmra.mxu0 %v156
    %v175 = vpop.f32.mrf.mxu0
    %v176 = vadd.f32 %v152, %v175
    %177 = vdwg.mxu0
    %v178 = vld [vmem:[%s4] sm:$0xff]
    %v179 = vld [vmem:[%s4 + $0x8] sm:$0xff]
    %v180 = vld [vmem:[%s4 + $0x10] sm:$0xff]
    %v181 = vld [vmem:[%s4 + $0x18] sm:$0xff]
    %v183 = vsel %vm154, 0.0, 0
    %185 = vmatpush.msra.mxu0 0.0
    %186 = vmatpush.msra.mxu0 0.0
    %187 = vmatpush.msra.mxu0 0.0
    %188 = vmatpush.msra.mxu0 0.0
    %189 = vmatpush.msra.mxu0 0.0
    %190 = vmatpush.msra.mxu0 0.0
    %191 = vmatpush.msra.mxu0 0.0
    %192 = vmatpush.msra.mxu0 0.0
    %193 = vmatpush.msra.mxu0 0.0
    %194 = vmatpush.msra.mxu0 0.0
    %195 = vmatpush.msra.mxu0 0.0
    %196 = vmatpush.msra.mxu0 0.0
    %197 = vmatpush.msra.mxu0 %v181
    %198 = vmatpush.msra.mxu0 %v180
    %199 = vmatpush.msra.mxu0 %v179
    %200 = vmatpush.msra.mxu0 %v178
    %201 = vmatmul.f32.gmra.mxu0 %v183
    %v202 = vpop.f32.mrf.mxu0
    %v203 = vadd.f32 0.0, %v202
    %204 = vdwg.mxu0
    %v205 = vadd.f32 %v176, %v203
    %v206 = vxor.u32 %v205, 2147483648
    %v207 = vmul.f32 %v206, 1.442695
    %v208 = vpow.pop %v207
    %v209 = vadd.f32 %v208, 1.0
    %v210 = vrcp.pop %v209
    %v211 = vmul.f32 %v209, %v210
    %v212 = vsub.f32 1.0, %v211
    %v213 = vmul.f32 %v210, %v212
    %v214 = vadd.f32 %v210, %v213
    %vm215 = vweird.f32 %v209
    %vm216 = vweird.f32 %v210
    %vm217 = vmor %vm215, %vm216
    %v218 = vsel %vm217, %v210, %v214
    %v219 = vand.u32 2147483647, %v209
    %vm220 = vcmp.eq.f32.partialorder %v219, 8.507059e+37
    %v221 = vand.u32 %v209, 2147483648
    %v222 = vor.u32 1.1754944e-38, %v221
    %v223 = vsel %vm220, %v222, %v218
    %v224 = vmul.f32 1.0, %v223
    %v225 = vtanh.pop %v205
    %v226 = vmul.f32 %v224, 0.0
    %228 = vrot.lane.b32.xlu0 %v225, 64
    %v229 = vpop.permute.xlu0 %228
    %v231 = vmul.f32 %v224, %v229
    %233 = vrot.lane.b32.xlu0 %v231, 32
    %v234 = vpop.permute.xlu0 %233
    %v236 = vadd.f32 %v226, %v234
    %v237 = vtanh.pop %v236
    %239 = vrot.lane.b32.xlu0 %v237, 64
    %v240 = vpop.permute.xlu0 %239
    %v242 = vmul.f32 %v224, %v240
    %244 = vrot.lane.b32.xlu0 %v242, 32
    %v245 = vpop.permute.xlu0 %244
    %v246 = vsel %vm154, %v245, 0
    %248 = vmatpush.msra.mxu0 0.0
    %249 = vmatpush.msra.mxu0 0.0
    %250 = vmatpush.msra.mxu0 0.0
    %251 = vmatpush.msra.mxu0 0.0
    %252 = vmatpush.msra.mxu0 0.0
    %253 = vmatpush.msra.mxu0 0.0
    %254 = vmatpush.msra.mxu0 0.0
    %255 = vmatpush.msra.mxu0 0.0
    %256 = vmatpush.msra.mxu0 0.0
    %257 = vmatpush.msra.mxu0 0.0
    %258 = vmatpush.msra.mxu0 0.0
    %259 = vmatpush.msra.mxu0 0.0
    %260 = vmatpush.msra.mxu0 %v181
    %261 = vmatpush.msra.mxu0 %v180
    %262 = vmatpush.msra.mxu0 %v179
    %263 = vmatpush.msra.mxu0 %v178
    %264 = vmatmul.f32.gmra.mxu0 %v246
    %v265 = vpop.f32.mrf.mxu0
    %v266 = vadd.f32 0.0, %v265
    %267 = vdwg.mxu0
    %v269 = vrot.slane %v266, 7
    %v271 = vadd.f32 %v176, %v269
    %v272 = vxor.u32 %v271, 2147483648
    %v273 = vmul.f32 %v272, 1.442695
    %v274 = vpow.pop %v273
    %v275 = vadd.f32 %v274, 1.0
    %v276 = vrcp.pop %v275
    %v277 = vmul.f32 %v275, %v276
    %v278 = vsub.f32 1.0, %v277
    %v279 = vmul.f32 %v276, %v278
    %v280 = vadd.f32 %v276, %v279
    %vm281 = vweird.f32 %v275
    %vm282 = vweird.f32 %v276
    %vm283 = vmor %vm281, %vm282
    %v284 = vsel %vm283, %v276, %v280
    %v285 = vand.u32 2147483647, %v275
    %vm286 = vcmp.eq.f32.partialorder %v285, 8.507059e+37
    %v287 = vand.u32 %v275, 2147483648
    %v288 = vor.u32 1.1754944e-38, %v287
    %v289 = vsel %vm286, %v288, %v284
    %v290 = vmul.f32 1.0, %v289
    %v291 = vtanh.pop %v271
    %v293 = vrot.slane %v236, 7
    %v295 = vmul.f32 %v290, %v293
    %297 = vrot.lane.b32.xlu0 %v291, 64
    %v298 = vpop.permute.xlu0 %297
    %v300 = vmul.f32 %v290, %v298
    %302 = vrot.lane.b32.xlu0 %v300, 32
    %v303 = vpop.permute.xlu0 %302
    %v305 = vadd.f32 %v295, %v303
    %v306 = vtanh.pop %v305
    %308 = vrot.lane.b32.xlu0 %v306, 64
    %v309 = vpop.permute.xlu0 %308
    %v311 = vmul.f32 %v290, %v309
    %v313 = vrot.slane %v311, 1
    %314 = vrot.lane.b32.xlu0 %v313, 32
    %v315 = vpop.permute.xlu0 %314
    %v316 = vsel %vm154, %v315, 0
    %318 = vmatpush.msra.mxu0 0.0
    %319 = vmatpush.msra.mxu0 0.0
    %320 = vmatpush.msra.mxu0 0.0
    %321 = vmatpush.msra.mxu0 0.0
    %322 = vmatpush.msra.mxu0 0.0
    %323 = vmatpush.msra.mxu0 0.0
    %324 = vmatpush.msra.mxu0 0.0
    %325 = vmatpush.msra.mxu0 0.0
    %326 = vmatpush.msra.mxu0 0.0
    %327 = vmatpush.msra.mxu0 0.0
    %328 = vmatpush.msra.mxu0 0.0
    %329 = vmatpush.msra.mxu0 0.0
    %330 = vmatpush.msra.mxu0 %v181
    %331 = vmatpush.msra.mxu0 %v180
    %332 = vmatpush.msra.mxu0 %v179
    %333 = vmatpush.msra.mxu0 %v178
    %334 = vmatmul.f32.gmra.mxu0 %v316
    %v335 = vpop.f32.mrf.mxu0
    %v336 = vadd.f32 0.0, %v335
    %337 = vdwg.mxu0
    %v339 = vrot.slane %v336, 6
    %v341 = vadd.f32 %v176, %v339
    %v342 = vxor.u32 %v341, 2147483648
    %v343 = vmul.f32 %v342, 1.442695
    %v344 = vpow.pop %v343
    %v345 = vadd.f32 %v344, 1.0
    %v346 = vrcp.pop %v345
    %v347 = vmul.f32 %v345, %v346
    %v348 = vsub.f32 1.0, %v347
    %v349 = vmul.f32 %v346, %v348
    %v350 = vadd.f32 %v346, %v349
    %vm351 = vweird.f32 %v345
    %vm352 = vweird.f32 %v346
    %vm353 = vmor %vm351, %vm352
    %v354 = vsel %vm353, %v346, %v350
    %v355 = vand.u32 2147483647, %v345
    %vm356 = vcmp.eq.f32.partialorder %v355, 8.507059e+37
    %v357 = vand.u32 %v345, 2147483648
    %v358 = vor.u32 1.1754944e-38, %v357
    %v359 = vsel %vm356, %v358, %v354
    %v360 = vmul.f32 1.0, %v359
    %v361 = vtanh.pop %v341
    %v363 = vrot.slane %v305, 7
    %v365 = vmul.f32 %v360, %v363
    %367 = vrot.lane.b32.xlu0 %v361, 64
    %v368 = vpop.permute.xlu0 %367
    %v370 = vmul.f32 %v360, %v368
    %372 = vrot.lane.b32.xlu0 %v370, 32
    %v373 = vpop.permute.xlu0 %372
    %v375 = vadd.f32 %v365, %v373
    %v376 = vtanh.pop %v375
    %378 = vrot.lane.b32.xlu0 %v376, 64
    %v379 = vpop.permute.xlu0 %378
    %v381 = vmul.f32 %v360, %v379
    %v383 = vrot.slane %v381, 2
    %384 = vrot.lane.b32.xlu0 %v383, 32
    %v385 = vpop.permute.xlu0 %384
    %v386 = vsel %vm154, %v385, 0
    %388 = vmatpush.msra.mxu0 0.0
    %389 = vmatpush.msra.mxu0 0.0
    %390 = vmatpush.msra.mxu0 0.0
    %391 = vmatpush.msra.mxu0 0.0
    %392 = vmatpush.msra.mxu0 0.0
    %393 = vmatpush.msra.mxu0 0.0
    %394 = vmatpush.msra.mxu0 0.0
    %395 = vmatpush.msra.mxu0 0.0
    %396 = vmatpush.msra.mxu0 0.0
    %397 = vmatpush.msra.mxu0 0.0
    %398 = vmatpush.msra.mxu0 0.0
    %399 = vmatpush.msra.mxu0 0.0
    %400 = vmatpush.msra.mxu0 %v181
    %401 = vmatpush.msra.mxu0 %v180
    %402 = vmatpush.msra.mxu0 %v179
    %403 = vmatpush.msra.mxu0 %v178
    %404 = vmatmul.f32.gmra.mxu0 %v386
    %v405 = vpop.f32.mrf.mxu0
    %v406 = vadd.f32 0.0, %v405
    %407 = vdwg.mxu0
    %v409 = vrot.slane %v406, 5
    %v411 = vadd.f32 %v176, %v409
    %v412 = vxor.u32 %v411, 2147483648
    %v413 = vmul.f32 %v412, 1.442695
    %v414 = vpow.pop %v413
    %v415 = vadd.f32 %v414, 1.0
    %v416 = vrcp.pop %v415
    %v417 = vmul.f32 %v415, %v416
    %v418 = vsub.f32 1.0, %v417
    %v419 = vmul.f32 %v416, %v418
    %v420 = vadd.f32 %v416, %v419
    %vm421 = vweird.f32 %v415
    %vm422 = vweird.f32 %v416
    %vm423 = vmor %vm421, %vm422
    %v424 = vsel %vm423, %v416, %v420
    %v425 = vand.u32 2147483647, %v415
    %vm426 = vcmp.eq.f32.partialorder %v425, 8.507059e+37
    %v427 = vand.u32 %v415, 2147483648
    %v428 = vor.u32 1.1754944e-38, %v427
    %v429 = vsel %vm426, %v428, %v424
    %v430 = vmul.f32 1.0, %v429
    %v431 = vtanh.pop %v411
    %v433 = vrot.slane %v375, 7
    %v435 = vmul.f32 %v430, %v433
    %437 = vrot.lane.b32.xlu0 %v431, 64
    %v438 = vpop.permute.xlu0 %437
    %v440 = vmul.f32 %v430, %v438
    %442 = vrot.lane.b32.xlu0 %v440, 32
    %v443 = vpop.permute.xlu0 %442
    %v445 = vadd.f32 %v435, %v443
    %v446 = vtanh.pop %v445
    %448 = vrot.lane.b32.xlu0 %v446, 64
    %v449 = vpop.permute.xlu0 %448
    %v451 = vmul.f32 %v430, %v449
    %v453 = vrot.slane %v451, 3
    %454 = vrot.lane.b32.xlu0 %v453, 32
    %v455 = vpop.permute.xlu0 %454
    %v456 = vsel %vm154, %v455, 0
    %458 = vmatpush.msra.mxu0 0.0
    %459 = vmatpush.msra.mxu0 0.0
    %460 = vmatpush.msra.mxu0 0.0
    %461 = vmatpush.msra.mxu0 0.0
    %462 = vmatpush.msra.mxu0 0.0
    %463 = vmatpush.msra.mxu0 0.0
    %464 = vmatpush.msra.mxu0 0.0
    %465 = vmatpush.msra.mxu0 0.0
    %466 = vmatpush.msra.mxu0 0.0
    %467 = vmatpush.msra.mxu0 0.0
    %468 = vmatpush.msra.mxu0 0.0
    %469 = vmatpush.msra.mxu0 0.0
    %470 = vmatpush.msra.mxu0 %v181
    %471 = vmatpush.msra.mxu0 %v180
    %472 = vmatpush.msra.mxu0 %v179
    %473 = vmatpush.msra.mxu0 %v178
    %474 = vmatmul.f32.gmra.mxu0 %v456
    %v475 = vpop.f32.mrf.mxu0
    %v476 = vadd.f32 0.0, %v475
    %477 = vdwg.mxu0
    %v479 = vrot.slane %v476, 4
    %v481 = vadd.f32 %v176, %v479
    %v482 = vxor.u32 %v481, 2147483648
    %v483 = vmul.f32 %v482, 1.442695
    %v484 = vpow.pop %v483
    %v485 = vadd.f32 %v484, 1.0
    %v486 = vrcp.pop %v485
    %v487 = vmul.f32 %v485, %v486
    %v488 = vsub.f32 1.0, %v487
    %v489 = vmul.f32 %v486, %v488
    %v490 = vadd.f32 %v486, %v489
    %vm491 = vweird.f32 %v485
    %vm492 = vweird.f32 %v486
    %vm493 = vmor %vm491, %vm492
    %v494 = vsel %vm493, %v486, %v490
    %v495 = vand.u32 2147483647, %v485
    %vm496 = vcmp.eq.f32.partialorder %v495, 8.507059e+37
    %v497 = vand.u32 %v485, 2147483648
    %v498 = vor.u32 1.1754944e-38, %v497
    %v499 = vsel %vm496, %v498, %v494
    %v500 = vmul.f32 1.0, %v499
    %v501 = vtanh.pop %v481
    %v503 = vrot.slane %v445, 7
    %v505 = vmul.f32 %v500, %v503
    %507 = vrot.lane.b32.xlu0 %v501, 64
    %v508 = vpop.permute.xlu0 %507
    %v510 = vmul.f32 %v500, %v508
    %512 = vrot.lane.b32.xlu0 %v510, 32
    %v513 = vpop.permute.xlu0 %512
    %v515 = vadd.f32 %v505, %v513
    %v516 = vtanh.pop %v515
    %518 = vrot.lane.b32.xlu0 %v516, 64
    %v519 = vpop.permute.xlu0 %518
    %v521 = vmul.f32 %v500, %v519
    %v523 = vrot.slane %v521, 4
    %524 = vrot.lane.b32.xlu0 %v523, 32
    %v525 = vpop.permute.xlu0 %524
    %v526 = vsel %vm154, %v525, 0
    %528 = vmatpush.msra.mxu0 0.0
    %529 = vmatpush.msra.mxu0 0.0
    %530 = vmatpush.msra.mxu0 0.0
    %531 = vmatpush.msra.mxu0 0.0
    %532 = vmatpush.msra.mxu0 0.0
    %533 = vmatpush.msra.mxu0 0.0
    %534 = vmatpush.msra.mxu0 0.0
    %535 = vmatpush.msra.mxu0 0.0
    %536 = vmatpush.msra.mxu0 0.0
    %537 = vmatpush.msra.mxu0 0.0
    %538 = vmatpush.msra.mxu0 0.0
    %539 = vmatpush.msra.mxu0 0.0
    %540 = vmatpush.msra.mxu0 %v181
    %541 = vmatpush.msra.mxu0 %v180
    %542 = vmatpush.msra.mxu0 %v179
    %543 = vmatpush.msra.mxu0 %v178
    %544 = vmatmul.f32.gmra.mxu0 %v526
    %v545 = vpop.f32.mrf.mxu0
    %v546 = vadd.f32 0.0, %v545
    %547 = vdwg.mxu0
    %v549 = vrot.slane %v546, 3
    %v551 = vadd.f32 %v176, %v549
    %v552 = vxor.u32 %v551, 2147483648
    %v553 = vmul.f32 %v552, 1.442695
    %v554 = vpow.pop %v553
    %v555 = vadd.f32 %v554, 1.0
    %v556 = vrcp.pop %v555
    %v557 = vmul.f32 %v555, %v556
    %v558 = vsub.f32 1.0, %v557
    %v559 = vmul.f32 %v556, %v558
    %v560 = vadd.f32 %v556, %v559
    %vm561 = vweird.f32 %v555
    %vm562 = vweird.f32 %v556
    %vm563 = vmor %vm561, %vm562
    %v564 = vsel %vm563, %v556, %v560
    %v565 = vand.u32 2147483647, %v555
    %vm566 = vcmp.eq.f32.partialorder %v565, 8.507059e+37
    %v567 = vand.u32 %v555, 2147483648
    %v568 = vor.u32 1.1754944e-38, %v567
    %v569 = vsel %vm566, %v568, %v564
    %v570 = vmul.f32 1.0, %v569
    %v571 = vtanh.pop %v551
    %v573 = vrot.slane %v515, 7
    %v575 = vmul.f32 %v570, %v573
    %577 = vrot.lane.b32.xlu0 %v571, 64
    %v578 = vpop.permute.xlu0 %577
    %v580 = vmul.f32 %v570, %v578
    %582 = vrot.lane.b32.xlu0 %v580, 32
    %v583 = vpop.permute.xlu0 %582
    %v585 = vadd.f32 %v575, %v583
    %v586 = vtanh.pop %v585
    %588 = vrot.lane.b32.xlu0 %v586, 64
    %v589 = vpop.permute.xlu0 %588
    %v591 = vmul.f32 %v570, %v589
    %v593 = vrot.slane %v591, 5
    %594 = vrot.lane.b32.xlu0 %v593, 32
    %v595 = vpop.permute.xlu0 %594
    %v596 = vsel %vm154, %v595, 0
    %598 = vmatpush.msra.mxu0 0.0
    %599 = vmatpush.msra.mxu0 0.0
    %600 = vmatpush.msra.mxu0 0.0
    %601 = vmatpush.msra.mxu0 0.0
    %602 = vmatpush.msra.mxu0 0.0
    %603 = vmatpush.msra.mxu0 0.0
    %604 = vmatpush.msra.mxu0 0.0
    %605 = vmatpush.msra.mxu0 0.0
    %606 = vmatpush.msra.mxu0 0.0
    %607 = vmatpush.msra.mxu0 0.0
    %608 = vmatpush.msra.mxu0 0.0
    %609 = vmatpush.msra.mxu0 0.0
    %610 = vmatpush.msra.mxu0 %v181
    %611 = vmatpush.msra.mxu0 %v180
    %612 = vmatpush.msra.mxu0 %v179
    %613 = vmatpush.msra.mxu0 %v178
    %614 = vmatmul.f32.gmra.mxu0 %v596
    %v615 = vpop.f32.mrf.mxu0
    %v616 = vadd.f32 0.0, %v615
    %617 = vdwg.mxu0
    %v619 = vrot.slane %v616, 2
    %v621 = vadd.f32 %v176, %v619
    %v622 = vxor.u32 %v621, 2147483648
    %v623 = vmul.f32 %v622, 1.442695
    %v624 = vpow.pop %v623
    %v625 = vadd.f32 %v624, 1.0
    %v626 = vrcp.pop %v625
    %v627 = vmul.f32 %v625, %v626
    %v628 = vsub.f32 1.0, %v627
    %v629 = vmul.f32 %v626, %v628
    %v630 = vadd.f32 %v626, %v629
    %vm631 = vweird.f32 %v625
    %vm632 = vweird.f32 %v626
    %vm633 = vmor %vm631, %vm632
    %v634 = vsel %vm633, %v626, %v630
    %v635 = vand.u32 2147483647, %v625
    %vm636 = vcmp.eq.f32.partialorder %v635, 8.507059e+37
    %v637 = vand.u32 %v625, 2147483648
    %v638 = vor.u32 1.1754944e-38, %v637
    %v639 = vsel %vm636, %v638, %v634
    %v640 = vmul.f32 1.0, %v639
    %v641 = vtanh.pop %v621
    %v643 = vrot.slane %v585, 7
    %v645 = vmul.f32 %v640, %v643
    %647 = vrot.lane.b32.xlu0 %v641, 64
    %v648 = vpop.permute.xlu0 %647
    %v650 = vmul.f32 %v640, %v648
    %652 = vrot.lane.b32.xlu0 %v650, 32
    %v653 = vpop.permute.xlu0 %652
    %v655 = vadd.f32 %v645, %v653
    %v656 = vtanh.pop %v655
    %658 = vrot.lane.b32.xlu0 %v656, 64
    %v659 = vpop.permute.xlu0 %658
    %v661 = vmul.f32 %v640, %v659
    %v663 = vrot.slane %v661, 6
    %664 = vrot.lane.b32.xlu0 %v663, 32
    %v665 = vpop.permute.xlu0 %664
    %v666 = vsel %vm154, %v665, 0
    %668 = vmatpush.msra.mxu0 0.0
    %669 = vmatpush.msra.mxu0 0.0
    %670 = vmatpush.msra.mxu0 0.0
    %671 = vmatpush.msra.mxu0 0.0
    %672 = vmatpush.msra.mxu0 0.0
    %673 = vmatpush.msra.mxu0 0.0
    %674 = vmatpush.msra.mxu0 0.0
    %675 = vmatpush.msra.mxu0 0.0
    %676 = vmatpush.msra.mxu0 0.0
    %677 = vmatpush.msra.mxu0 0.0
    %678 = vmatpush.msra.mxu0 0.0
    %679 = vmatpush.msra.mxu0 0.0
    %680 = vmatpush.msra.mxu0 %v181
    %681 = vmatpush.msra.mxu0 %v180
    %682 = vmatpush.msra.mxu0 %v179
    %683 = vmatpush.msra.mxu0 %v178
    %684 = vmatmul.f32.gmra.mxu0 %v666
    %v685 = vpop.f32.mrf.mxu0
    %v686 = vadd.f32 0.0, %v685
    %687 = vdwg.mxu0
    %v689 = vrot.slane %v686, 1
    %v691 = vadd.f32 %v176, %v689
    %v692 = vxor.u32 %v691, 2147483648
    %v693 = vmul.f32 %v692, 1.442695
    %v694 = vpow.pop %v693
    %v695 = vadd.f32 %v694, 1.0
    %v696 = vrcp.pop %v695
    %v697 = vmul.f32 %v695, %v696
    %v698 = vsub.f32 1.0, %v697
    %v699 = vmul.f32 %v696, %v698
    %v700 = vadd.f32 %v696, %v699
    %vm701 = vweird.f32 %v695
    %vm702 = vweird.f32 %v696
    %vm703 = vmor %vm701, %vm702
    %v704 = vsel %vm703, %v696, %v700
    %v705 = vand.u32 2147483647, %v695
    %vm706 = vcmp.eq.f32.partialorder %v705, 8.507059e+37
    %v707 = vand.u32 %v695, 2147483648
    %v708 = vor.u32 1.1754944e-38, %v707
    %v709 = vsel %vm706, %v708, %v704
    %v710 = vmul.f32 1.0, %v709
    %v711 = vtanh.pop %v691
    %v713 = vrot.slane %v655, 7
    %v715 = vmul.f32 %v710, %v713
    %717 = vrot.lane.b32.xlu0 %v711, 64
    %v718 = vpop.permute.xlu0 %717
    %v720 = vmul.f32 %v710, %v718
    %722 = vrot.lane.b32.xlu0 %v720, 32
    %v723 = vpop.permute.xlu0 %722
    %v725 = vadd.f32 %v715, %v723
    %v726 = vtanh.pop %v725
    %728 = vrot.lane.b32.xlu0 %v726, 64
    %v729 = vpop.permute.xlu0 %728
    %v731 = vmul.f32 %v710, %v729
    %v732 = vld [vmem:[%s6] sm:$0xff]
    %v733 = vld [vmem:[%s6 + $0x8] sm:$0xff]
    %v734 = vld [vmem:[%s6 + $0x10] sm:$0xff]
    %v735 = vld [vmem:[%s6 + $0x18] sm:$0xff]
    %v736 = vld [vmem:[%s8] sm:$0x1]
    %v738 = vrot.slane %v731, 7
    %739 = vrot.lane.b32.xlu0 %v738, 32
    %v740 = vpop.permute.xlu0 %739
    %v741 = vsel %vm154, %v740, 0
    %743 = vmatpush.msra.mxu0 0.0
    %744 = vmatpush.msra.mxu0 0.0
    %745 = vmatpush.msra.mxu0 0.0
    %746 = vmatpush.msra.mxu0 0.0
    %747 = vmatpush.msra.mxu0 0.0
    %748 = vmatpush.msra.mxu0 0.0
    %749 = vmatpush.msra.mxu0 0.0
    %750 = vmatpush.msra.mxu0 0.0
    %751 = vmatpush.msra.mxu0 0.0
    %752 = vmatpush.msra.mxu0 0.0
    %753 = vmatpush.msra.mxu0 0.0
    %754 = vmatpush.msra.mxu0 0.0
    %755 = vmatpush.msra.mxu0 %v735
    %756 = vmatpush.msra.mxu0 %v734
    %757 = vmatpush.msra.mxu0 %v733
    %758 = vmatpush.msra.mxu0 %v732
    %759 = vmatmul.f32.gmra.mxu0 %v741
    %v760 = vpop.f32.mrf.mxu0
    %v761 = vadd.f32 %v736, %v760
    %762 = vdwg.mxu0
    %v763 = vld [vmem:[%s9] sm:$0x1]
    %v764 = vld [vmem:[%s10] sm:$0x1]
    %v765 = vld [vmem:[#allocation3] sm:$0xff]
    %v766 = vld [vmem:[#allocation3 + $0x8] sm:$0xff]
    %v767 = vld [vmem:[#allocation3 + $0x10] sm:$0xff]
    %v768 = vld [vmem:[#allocation3 + $0x18] sm:$0xff]
    %v770 = vsel %vm154, %v763, 0
    %772 = vmatpush.msra.mxu0 0.0
    %773 = vmatpush.msra.mxu0 0.0
    %774 = vmatpush.msra.mxu0 0.0
    %775 = vmatpush.msra.mxu0 0.0
    %776 = vmatpush.msra.mxu0 0.0
    %777 = vmatpush.msra.mxu0 0.0
    %778 = vmatpush.msra.mxu0 0.0
    %779 = vmatpush.msra.mxu0 0.0
    %780 = vmatpush.msra.mxu0 0.0
    %781 = vmatpush.msra.mxu0 0.0
    %782 = vmatpush.msra.mxu0 0.0
    %783 = vmatpush.msra.mxu0 0.0
    %784 = vmatpush.msra.mxu0 %v768
    %785 = vmatpush.msra.mxu0 %v767
    %786 = vmatpush.msra.mxu0 %v766
    %787 = vmatpush.msra.mxu0 %v765
    %788 = vmatmul.f32.gmra.mxu0 %v770
    %v789 = vpop.f32.mrf.mxu0
    %v790 = vadd.f32 0.0, %v789
    %791 = vdwg.mxu0
    %v792 = vadd.f32 %v761, %v790
    %v793 = vxor.u32 %v792, 2147483648
    %v794 = vmul.f32 %v793, 1.442695
    %v795 = vpow.pop %v794
    %v796 = vadd.f32 %v795, 1.0
    %v797 = vrcp.pop %v796
    %v798 = vmul.f32 %v796, %v797
    %v799 = vsub.f32 1.0, %v798
    %v800 = vmul.f32 %v797, %v799
    %v801 = vadd.f32 %v797, %v800
    %vm802 = vweird.f32 %v796
    %vm803 = vweird.f32 %v797
    %vm804 = vmor %vm802, %vm803
    %v805 = vsel %vm804, %v797, %v801
    %v806 = vand.u32 2147483647, %v796
    %vm807 = vcmp.eq.f32.partialorder %v806, 8.507059e+37
    %v808 = vand.u32 %v796, 2147483648
    %v809 = vor.u32 1.1754944e-38, %v808
    %v810 = vsel %vm807, %v809, %v805
    %v811 = vmul.f32 1.0, %v810
    %v812 = vtanh.pop %v792
    %v814 = vperm.slane %v764, 0
    %815 = vrot.lane.b32.xlu0 %v814, 32
    %v816 = vpop.permute.xlu0 %815
    %v818 = vmul.f32 %v811, %v816
    %820 = vrot.lane.b32.xlu0 %v812, 64
    %v821 = vpop.permute.xlu0 %820
    %v823 = vmul.f32 %v811, %v821
    %825 = vrot.lane.b32.xlu0 %v823, 32
    %v826 = vpop.permute.xlu0 %825
    %v828 = vadd.f32 %v818, %v826
    %v829 = vtanh.pop %v828
    %831 = vrot.lane.b32.xlu0 %v829, 64
    %v832 = vpop.permute.xlu0 %831
    %v834 = vmul.f32 %v811, %v832
    %v835 = vld [vmem:[%s1] sm:$0xff]
    %v836 = vld [vmem:[%s1 + $0x8] sm:$0xff]
    %v837 = vld [vmem:[%s1 + $0x10] sm:$0xff]
    %v838 = vld [vmem:[%s1 + $0x18] sm:$0x3f]
    %839 = vset.pattern.permute.xlu0 0
    %840 = vperm.xlu0 %839, %v835
    %v841 = vpop.permute.xlu0 %840
    %842 = vset.pattern.permute.xlu0 0
    %843 = vperm.xlu0 %842, %v836
    %v844 = vpop.permute.xlu0 %843
    %845 = vset.pattern.permute.xlu0 0
    %846 = vperm.xlu0 %845, %v837
    %v847 = vpop.permute.xlu0 %846
    %848 = vset.pattern.permute.xlu0 0
    %849 = vperm.xlu0 %848, %v838
    %v850 = vpop.permute.xlu0 %849
    %vm851 = vcmp.eq.s32.totalorder %v111, %v841
    %vm852 = vcmp.eq.s32.totalorder %v111, %v844
    %vm853 = vcmp.eq.s32.totalorder %v111, %v847
    %vm854 = vcmp.eq.s32.totalorder %v111, %v850
    %v855 = vsel %vm851, 1, 0
    %v856 = vsel %vm852, 1, 0
    %v857 = vsel %vm853, 1, 0
    %v858 = vsel %vm854, 1, 0
    %v859 = vcvt.s32.f32 %v855
    %v860 = vcvt.s32.f32 %v856
    %v861 = vcvt.s32.f32 %v857
    %v862 = vcvt.s32.f32 %v858
    %v864 = vsel %vm118, %v859, 0
    %v867 = vsel %vm118, %v860, 0
    %v870 = vsel %vm118, %v861, 0
    %v873 = vsel %vm118, %v862, 0
    %875 = vmatpush.msra.mxu0 0.0
    %876 = vmatpush.msra.mxu0 0.0
    %877 = vmatpush.msra.mxu0 0.0
    %878 = vmatpush.msra.mxu0 0.0
    %879 = vmatpush.msra.mxu0 0.0
    %880 = vmatpush.msra.mxu0 0.0
    %881 = vmatpush.msra.mxu0 0.0
    %882 = vmatpush.msra.mxu0 0.0
    %883 = vmatpush.msra.mxu0 0.0
    %884 = vmatpush.msra.mxu0 %v124
    %885 = vmatpush.msra.mxu0 %v107
    %886 = vmatpush.msra.mxu0 %v106
    %887 = vmatpush.msra.mxu0 %v105
    %888 = vmatpush.msra.mxu0 %v104
    %889 = vmatpush.msra.mxu0 %v103
    %890 = vmatpush.msra.mxu0 %v102
    %891 = vmatmul.f32.gmra.mxu0 %v864
    %v892 = vpop.f32.mrf.mxu0
    %v893 = vadd.f32 0.0, %v892
    %894 = vmatmul.f32.gmra.mxu0 %v867
    %v895 = vpop.f32.mrf.mxu0
    %v896 = vadd.f32 0.0, %v895
    %897 = vmatmul.f32.gmra.mxu0 %v870
    %v898 = vpop.f32.mrf.mxu0
    %v899 = vadd.f32 0.0, %v898
    %900 = vmatmul.f32.gmra.mxu0 %v873
    %v901 = vpop.f32.mrf.mxu0
    %v902 = vadd.f32 0.0, %v901
    %903 = vdwg.mxu0
    %v904 = vld [vmem:[#allocation5] sm:$0xff]
    %v905 = vld [vmem:[#allocation5 + $0x8] sm:$0xff]
    %v906 = vld [vmem:[#allocation5 + $0x10] sm:$0xff]
    %v907 = vld [vmem:[#allocation5 + $0x18] sm:$0xff]
    %v908 = vld [vmem:[%s13] sm:$0x1]
    %v910 = vperm.slane %v908, 0
    %v913 = vsel %vm154, %v893, 0
    %v916 = vsel %vm154, %v896, 0
    %v919 = vsel %vm154, %v899, 0
    %v922 = vsel %vm154, %v902, 0
    %924 = vmatpush.msra.mxu0 0.0
    %925 = vmatpush.msra.mxu0 0.0
    %926 = vmatpush.msra.mxu0 0.0
    %927 = vmatpush.msra.mxu0 0.0
    %928 = vmatpush.msra.mxu0 0.0
    %929 = vmatpush.msra.mxu0 0.0
    %930 = vmatpush.msra.mxu0 0.0
    %931 = vmatpush.msra.mxu0 0.0
    %932 = vmatpush.msra.mxu0 0.0
    %933 = vmatpush.msra.mxu0 0.0
    %934 = vmatpush.msra.mxu0 0.0
    %935 = vmatpush.msra.mxu0 0.0
    %936 = vmatpush.msra.mxu0 %v907
    %937 = vmatpush.msra.mxu0 %v906
    %938 = vmatpush.msra.mxu0 %v905
    %939 = vmatpush.msra.mxu0 %v904
    %940 = vmatmul.f32.gmra.mxu0 %v913
    %v941 = vpop.f32.mrf.mxu0
    %v942 = vadd.f32 %v910, %v941
    %943 = vmatmul.f32.gmra.mxu0 %v916
    %v944 = vpop.f32.mrf.mxu0
    %v945 = vadd.f32 %v910, %v944
    %946 = vmatmul.f32.gmra.mxu0 %v919
    %v947 = vpop.f32.mrf.mxu0
    %v948 = vadd.f32 %v910, %v947
    %949 = vmatmul.f32.gmra.mxu0 %v922
    %v950 = vpop.f32.mrf.mxu0
    %v951 = vadd.f32 %v910, %v950
    %952 = vdwg.mxu0
    %v953 = vld [vmem:[#allocation7] sm:$0xff]
    %v954 = vld [vmem:[#allocation7 + $0x8] sm:$0xff]
    %v955 = vld [vmem:[#allocation7 + $0x10] sm:$0xff]
    %v956 = vld [vmem:[#allocation7 + $0x18] sm:$0xff]
    %957 = vmatpush.msra.mxu0 0.0
    %958 = vmatpush.msra.mxu0 0.0
    %959 = vmatpush.msra.mxu0 0.0
    %960 = vmatpush.msra.mxu0 0.0
    %961 = vmatpush.msra.mxu0 0.0
    %962 = vmatpush.msra.mxu0 0.0
    %963 = vmatpush.msra.mxu0 0.0
    %964 = vmatpush.msra.mxu0 0.0
    %965 = vmatpush.msra.mxu0 0.0
    %966 = vmatpush.msra.mxu0 0.0
    %967 = vmatpush.msra.mxu0 0.0
    %968 = vmatpush.msra.mxu0 0.0
    %969 = vmatpush.msra.mxu0 %v956
    %970 = vmatpush.msra.mxu0 %v955
    %971 = vmatpush.msra.mxu0 %v954
    %972 = vmatpush.msra.mxu0 %v953
    %973 = vmatmul.f32.gmra.mxu0 %v183
    %v974 = vpop.f32.mrf.mxu0
    %v975 = vadd.f32 0.0, %v974
    %976 = vdwg.mxu0
    %v977 = vadd.f32 %v942, %v975
    %v978 = vxor.u32 %v977, 2147483648
    %v979 = vmul.f32 %v978, 1.442695
    %v980 = vpow.pop %v979
    %v981 = vadd.f32 %v980, 1.0
    %v982 = vrcp.pop %v981
    %v983 = vmul.f32 %v981, %v982
    %v984 = vsub.f32 1.0, %v983
    %v985 = vmul.f32 %v982, %v984
    %v986 = vadd.f32 %v982, %v985
    %vm987 = vweird.f32 %v981
    %vm988 = vweird.f32 %v982
    %vm989 = vmor %vm987, %vm988
    %v990 = vsel %vm989, %v982, %v986
    %v991 = vand.u32 2147483647, %v981
    %vm992 = vcmp.eq.f32.partialorder %v991, 8.507059e+37
    %v993 = vand.u32 %v981, 2147483648
    %v994 = vor.u32 1.1754944e-38, %v993
    %v995 = vsel %vm992, %v994, %v990
    %v996 = vmul.f32 1.0, %v995
    %v997 = vtanh.pop %v977
    %v998 = vmul.f32 %v996, 0.0
    %1000 = vrot.lane.b32.xlu0 %v997, 64
    %v1001 = vpop.permute.xlu0 %1000
    %v1003 = vmul.f32 %v996, %v1001
    %1005 = vrot.lane.b32.xlu0 %v1003, 32
    %v1006 = vpop.permute.xlu0 %1005
    %v1008 = vadd.f32 %v998, %v1006
    %v1009 = vtanh.pop %v1008
    %1011 = vrot.lane.b32.xlu0 %v1009, 64
    %v1012 = vpop.permute.xlu0 %1011
    %v1014 = vmul.f32 %v996, %v1012
    %1016 = vrot.lane.b32.xlu0 %v1014, 32
    %v1017 = vpop.permute.xlu0 %1016
    %v1018 = vsel %vm154, %v1017, 0
    %1020 = vmatpush.msra.mxu0 0.0
    %1021 = vmatpush.msra.mxu0 0.0
    %1022 = vmatpush.msra.mxu0 0.0
    %1023 = vmatpush.msra.mxu0 0.0
    %1024 = vmatpush.msra.mxu0 0.0
    %1025 = vmatpush.msra.mxu0 0.0
    %1026 = vmatpush.msra.mxu0 0.0
    %1027 = vmatpush.msra.mxu0 0.0
    %1028 = vmatpush.msra.mxu0 0.0
    %1029 = vmatpush.msra.mxu0 0.0
    %1030 = vmatpush.msra.mxu0 0.0
    %1031 = vmatpush.msra.mxu0 0.0
    %1032 = vmatpush.msra.mxu0 %v956
    %1033 = vmatpush.msra.mxu0 %v955
    %1034 = vmatpush.msra.mxu0 %v954
    %1035 = vmatpush.msra.mxu0 %v953
    %1036 = vmatmul.f32.gmra.mxu0 %v1018
    %v1037 = vpop.f32.mrf.mxu0
    %v1038 = vadd.f32 0.0, %v1037
    %1039 = vdwg.mxu0
    %v1041 = vrot.slane %v1038, 3
    %v1043 = vadd.f32 %v942, %v1041
    %v1044 = vadd.f32 %v945, %v1041
    %v1045 = vxor.u32 %v1043, 2147483648
    %v1046 = vxor.u32 %v1044, 2147483648
    %v1047 = vmul.f32 %v1045, 1.442695
    %v1048 = vpow.pop %v1047
    %v1049 = vmul.f32 %v1046, 1.442695
    %v1050 = vpow.pop %v1049
    %v1051 = vadd.f32 %v1048, 1.0
    %v1052 = vadd.f32 %v1050, 1.0
    %v1053 = vrcp.pop %v1051
    %v1054 = vmul.f32 %v1051, %v1053
    %v1055 = vsub.f32 1.0, %v1054
    %v1056 = vmul.f32 %v1053, %v1055
    %v1057 = vadd.f32 %v1053, %v1056
    %vm1058 = vweird.f32 %v1051
    %vm1059 = vweird.f32 %v1053
    %vm1060 = vmor %vm1058, %vm1059
    %v1061 = vsel %vm1060, %v1053, %v1057
    %v1062 = vand.u32 2147483647, %v1051
    %vm1063 = vcmp.eq.f32.partialorder %v1062, 8.507059e+37
    %v1064 = vand.u32 %v1051, 2147483648
    %v1065 = vor.u32 1.1754944e-38, %v1064
    %v1066 = vsel %vm1063, %v1065, %v1061
    %v1067 = vmul.f32 1.0, %v1066
    %v1068 = vrcp.pop %v1052
    %v1069 = vmul.f32 %v1052, %v1068
    %v1070 = vsub.f32 1.0, %v1069
    %v1071 = vmul.f32 %v1068, %v1070
    %v1072 = vadd.f32 %v1068, %v1071
    %vm1073 = vweird.f32 %v1052
    %vm1074 = vweird.f32 %v1068
    %vm1075 = vmor %vm1073, %vm1074
    %v1076 = vsel %vm1075, %v1068, %v1072
    %v1077 = vand.u32 2147483647, %v1052
    %vm1078 = vcmp.eq.f32.partialorder %v1077, 8.507059e+37
    %v1079 = vand.u32 %v1052, 2147483648
    %v1080 = vor.u32 1.1754944e-38, %v1079
    %v1081 = vsel %vm1078, %v1080, %v1076
    %v1082 = vmul.f32 1.0, %v1081
    %v1083 = vtanh.pop %v1043
    %v1084 = vtanh.pop %v1044
    %v1086 = vrot.slane %v1008, 3
    %v1088 = vmul.f32 %v1067, %v1086
    %v1089 = vmul.f32 %v1082, %v1086
    %1092 = vrot.lane.b32.xlu0 %v1083, 64
    %v1093 = vpop.permute.xlu0 %1092
    %1094 = vrot.lane.b32.xlu0 %v1084, 64
    %v1095 = vpop.permute.xlu0 %1094
    %v1098 = vmul.f32 %v1067, %v1093
    %v1099 = vmul.f32 %v1082, %v1095
    %1102 = vrot.lane.b32.xlu0 %v1098, 32
    %v1103 = vpop.permute.xlu0 %1102
    %1104 = vrot.lane.b32.xlu0 %v1099, 32
    %v1105 = vpop.permute.xlu0 %1104
    %v1108 = vadd.f32 %v1088, %v1103
    %v1109 = vadd.f32 %v1089, %v1105
    %v1110 = vtanh.pop %v1108
    %v1111 = vtanh.pop %v1109
    %1114 = vrot.lane.b32.xlu0 %v1110, 64
    %v1115 = vpop.permute.xlu0 %1114
    %1116 = vrot.lane.b32.xlu0 %v1111, 64
    %v1117 = vpop.permute.xlu0 %1116
    %v1120 = vmul.f32 %v1067, %v1115
    %v1121 = vmul.f32 %v1082, %v1117
    %vm1124 = vcmask 1042432
    %v1125 = vrot.slane %v1120, 5
    %v1126 = vrot.slane %v1121, 5
    %v1127 = vsel %vm1124, %v1125, %v1126
    %1128 = vrot.lane.b32.xlu0 %v1127, 32
    %v1129 = vpop.permute.xlu0 %1128
    %v1130 = vsel %vm154, %v1129, 0
    %1132 = vmatpush.msra.mxu0 0.0
    %1133 = vmatpush.msra.mxu0 0.0
    %1134 = vmatpush.msra.mxu0 0.0
    %1135 = vmatpush.msra.mxu0 0.0
    %1136 = vmatpush.msra.mxu0 0.0
    %1137 = vmatpush.msra.mxu0 0.0
    %1138 = vmatpush.msra.mxu0 0.0
    %1139 = vmatpush.msra.mxu0 0.0
    %1140 = vmatpush.msra.mxu0 0.0
    %1141 = vmatpush.msra.mxu0 0.0
    %1142 = vmatpush.msra.mxu0 0.0
    %1143 = vmatpush.msra.mxu0 0.0
    %1144 = vmatpush.msra.mxu0 %v956
    %1145 = vmatpush.msra.mxu0 %v955
    %1146 = vmatpush.msra.mxu0 %v954
    %1147 = vmatpush.msra.mxu0 %v953
    %1148 = vmatmul.f32.gmra.mxu0 %v1130
    %v1149 = vpop.f32.mrf.mxu0
    %v1150 = vadd.f32 0.0, %v1149
    %1151 = vdwg.mxu0
    %v1153 = vrot.slane %v1150, 6
    %v1155 = vadd.f32 %v945, %v1153
    %v1156 = vxor.u32 %v1155, 2147483648
    %v1157 = vmul.f32 %v1156, 1.442695
    %v1158 = vpow.pop %v1157
    %v1159 = vadd.f32 %v1158, 1.0
    %v1160 = vrcp.pop %v1159
    %v1161 = vmul.f32 %v1159, %v1160
    %v1162 = vsub.f32 1.0, %v1161
    %v1163 = vmul.f32 %v1160, %v1162
    %v1164 = vadd.f32 %v1160, %v1163
    %vm1165 = vweird.f32 %v1159
    %vm1166 = vweird.f32 %v1160
    %vm1167 = vmor %vm1165, %vm1166
    %v1168 = vsel %vm1167, %v1160, %v1164
    %v1169 = vand.u32 2147483647, %v1159
    %vm1170 = vcmp.eq.f32.partialorder %v1169, 8.507059e+37
    %v1171 = vand.u32 %v1159, 2147483648
    %v1172 = vor.u32 1.1754944e-38, %v1171
    %v1173 = vsel %vm1170, %v1172, %v1168
    %v1174 = vmul.f32 1.0, %v1173
    %v1175 = vtanh.pop %v1155
    %vm1178 = vcmask 1044480
    %v1179 = vrot.slane %v1108, 3
    %v1180 = vrot.slane %v1109, 3
    %v1181 = vsel %vm1178, %v1179, %v1180
    %v1183 = vmul.f32 %v1174, %v1181
    %1185 = vrot.lane.b32.xlu0 %v1175, 64
    %v1186 = vpop.permute.xlu0 %1185
    %v1188 = vmul.f32 %v1174, %v1186
    %1190 = vrot.lane.b32.xlu0 %v1188, 32
    %v1191 = vpop.permute.xlu0 %1190
    %v1193 = vadd.f32 %v1183, %v1191
    %v1194 = vtanh.pop %v1193
    %1196 = vrot.lane.b32.xlu0 %v1194, 64
    %v1197 = vpop.permute.xlu0 %1196
    %v1199 = vmul.f32 %v1174, %v1197
    %v1201 = vrot.slane %v1199, 2
    %1202 = vrot.lane.b32.xlu0 %v1201, 32
    %v1203 = vpop.permute.xlu0 %1202
    %v1204 = vsel %vm154, %v1203, 0
    %1206 = vmatpush.msra.mxu0 0.0
    %1207 = vmatpush.msra.mxu0 0.0
    %1208 = vmatpush.msra.mxu0 0.0
    %1209 = vmatpush.msra.mxu0 0.0
    %1210 = vmatpush.msra.mxu0 0.0
    %1211 = vmatpush.msra.mxu0 0.0
    %1212 = vmatpush.msra.mxu0 0.0
    %1213 = vmatpush.msra.mxu0 0.0
    %1214 = vmatpush.msra.mxu0 0.0
    %1215 = vmatpush.msra.mxu0 0.0
    %1216 = vmatpush.msra.mxu0 0.0
    %1217 = vmatpush.msra.mxu0 0.0
    %1218 = vmatpush.msra.mxu0 %v956
    %1219 = vmatpush.msra.mxu0 %v955
    %1220 = vmatpush.msra.mxu0 %v954
    %1221 = vmatpush.msra.mxu0 %v953
    %1222 = vmatmul.f32.gmra.mxu0 %v1204
    %v1223 = vpop.f32.mrf.mxu0
    %v1224 = vadd.f32 0.0, %v1223
    %1225 = vdwg.mxu0
    %v1227 = vrot.slane %v1224, 1
    %v1229 = vadd.f32 %v945, %v1227
    %v1230 = vadd.f32 %v948, %v1227
    %v1231 = vxor.u32 %v1229, 2147483648
    %v1232 = vxor.u32 %v1230, 2147483648
    %v1233 = vmul.f32 %v1231, 1.442695
    %v1234 = vpow.pop %v1233
    %v1235 = vmul.f32 %v1232, 1.442695
    %v1236 = vpow.pop %v1235
    %v1237 = vadd.f32 %v1234, 1.0
    %v1238 = vadd.f32 %v1236, 1.0
    %v1239 = vrcp.pop %v1237
    %v1240 = vmul.f32 %v1237, %v1239
    %v1241 = vsub.f32 1.0, %v1240
    %v1242 = vmul.f32 %v1239, %v1241
    %v1243 = vadd.f32 %v1239, %v1242
    %vm1244 = vweird.f32 %v1237
    %vm1245 = vweird.f32 %v1239
    %vm1246 = vmor %vm1244, %vm1245
    %v1247 = vsel %vm1246, %v1239, %v1243
    %v1248 = vand.u32 2147483647, %v1237
    %vm1249 = vcmp.eq.f32.partialorder %v1248, 8.507059e+37
    %v1250 = vand.u32 %v1237, 2147483648
    %v1251 = vor.u32 1.1754944e-38, %v1250
    %v1252 = vsel %vm1249, %v1251, %v1247
    %v1253 = vmul.f32 1.0, %v1252
    %v1254 = vrcp.pop %v1238
    %v1255 = vmul.f32 %v1238, %v1254
    %v1256 = vsub.f32 1.0, %v1255
    %v1257 = vmul.f32 %v1254, %v1256
    %v1258 = vadd.f32 %v1254, %v1257
    %vm1259 = vweird.f32 %v1238
    %vm1260 = vweird.f32 %v1254
    %vm1261 = vmor %vm1259, %vm1260
    %v1262 = vsel %vm1261, %v1254, %v1258
    %v1263 = vand.u32 2147483647, %v1238
    %vm1264 = vcmp.eq.f32.partialorder %v1263, 8.507059e+37
    %v1265 = vand.u32 %v1238, 2147483648
    %v1266 = vor.u32 1.1754944e-38, %v1265
    %v1267 = vsel %vm1264, %v1266, %v1262
    %v1268 = vmul.f32 1.0, %v1267
    %v1269 = vtanh.pop %v1229
    %v1270 = vtanh.pop %v1230
    %v1272 = vrot.slane %v1193, 3
    %v1274 = vmul.f32 %v1253, %v1272
    %v1275 = vmul.f32 %v1268, %v1272
    %1278 = vrot.lane.b32.xlu0 %v1269, 64
    %v1279 = vpop.permute.xlu0 %1278
    %1280 = vrot.lane.b32.xlu0 %v1270, 64
    %v1281 = vpop.permute.xlu0 %1280
    %v1284 = vmul.f32 %v1253, %v1279
    %v1285 = vmul.f32 %v1268, %v1281
    %1288 = vrot.lane.b32.xlu0 %v1284, 32
    %v1289 = vpop.permute.xlu0 %1288
    %1290 = vrot.lane.b32.xlu0 %v1285, 32
    %v1291 = vpop.permute.xlu0 %1290
    %v1294 = vadd.f32 %v1274, %v1289
    %v1295 = vadd.f32 %v1275, %v1291
    %v1296 = vtanh.pop %v1294
    %v1297 = vtanh.pop %v1295
    %1300 = vrot.lane.b32.xlu0 %v1296, 64
    %v1301 = vpop.permute.xlu0 %1300
    %1302 = vrot.lane.b32.xlu0 %v1297, 64
    %v1303 = vpop.permute.xlu0 %1302
    %v1306 = vmul.f32 %v1253, %v1301
    %v1307 = vmul.f32 %v1268, %v1303
    %vm1310 = vcmask 1040384
    %v1311 = vrot.slane %v1306, 7
    %v1312 = vrot.slane %v1307, 7
    %v1313 = vsel %vm1310, %v1311, %v1312
    %1314 = vrot.lane.b32.xlu0 %v1313, 32
    %v1315 = vpop.permute.xlu0 %1314
    %v1316 = vsel %vm154, %v1315, 0
    %1318 = vmatpush.msra.mxu0 0.0
    %1319 = vmatpush.msra.mxu0 0.0
    %1320 = vmatpush.msra.mxu0 0.0
    %1321 = vmatpush.msra.mxu0 0.0
    %1322 = vmatpush.msra.mxu0 0.0
    %1323 = vmatpush.msra.mxu0 0.0
    %1324 = vmatpush.msra.mxu0 0.0
    %1325 = vmatpush.msra.mxu0 0.0
    %1326 = vmatpush.msra.mxu0 0.0
    %1327 = vmatpush.msra.mxu0 0.0
    %1328 = vmatpush.msra.mxu0 0.0
    %1329 = vmatpush.msra.mxu0 0.0
    %1330 = vmatpush.msra.mxu0 %v956
    %1331 = vmatpush.msra.mxu0 %v955
    %1332 = vmatpush.msra.mxu0 %v954
    %1333 = vmatpush.msra.mxu0 %v953
    %1334 = vmatmul.f32.gmra.mxu0 %v1316
    %v1335 = vpop.f32.mrf.mxu0
    %v1336 = vadd.f32 0.0, %v1335
    %1337 = vdwg.mxu0
    %v1339 = vrot.slane %v1336, 4
    %v1341 = vadd.f32 %v948, %v1339
    %v1342 = vadd.f32 %v951, %v1339
    %v1343 = vxor.u32 %v1341, 2147483648
    %v1344 = vxor.u32 %v1342, 2147483648
    %v1345 = vmul.f32 %v1343, 1.442695
    %v1346 = vpow.pop %v1345
    %v1347 = vmul.f32 %v1344, 1.442695
    %v1348 = vpow.pop %v1347
    %v1349 = vadd.f32 %v1346, 1.0
    %v1350 = vadd.f32 %v1348, 1.0
    %v1351 = vrcp.pop %v1349
    %v1352 = vmul.f32 %v1349, %v1351
    %v1353 = vsub.f32 1.0, %v1352
    %v1354 = vmul.f32 %v1351, %v1353
    %v1355 = vadd.f32 %v1351, %v1354
    %vm1356 = vweird.f32 %v1349
    %vm1357 = vweird.f32 %v1351
    %vm1358 = vmor %vm1356, %vm1357
    %v1359 = vsel %vm1358, %v1351, %v1355
    %v1360 = vand.u32 2147483647, %v1349
    %vm1361 = vcmp.eq.f32.partialorder %v1360, 8.507059e+37
    %v1362 = vand.u32 %v1349, 2147483648
    %v1363 = vor.u32 1.1754944e-38, %v1362
    %v1364 = vsel %vm1361, %v1363, %v1359
    %v1365 = vmul.f32 1.0, %v1364
    %v1366 = vrcp.pop %v1350
    %v1367 = vmul.f32 %v1350, %v1366
    %v1368 = vsub.f32 1.0, %v1367
    %v1369 = vmul.f32 %v1366, %v1368
    %v1370 = vadd.f32 %v1366, %v1369
    %vm1371 = vweird.f32 %v1350
    %vm1372 = vweird.f32 %v1366
    %vm1373 = vmor %vm1371, %vm1372
    %v1374 = vsel %vm1373, %v1366, %v1370
    %v1375 = vand.u32 2147483647, %v1350
    %vm1376 = vcmp.eq.f32.partialorder %v1375, 8.507059e+37
    %v1377 = vand.u32 %v1350, 2147483648
    %v1378 = vor.u32 1.1754944e-38, %v1377
    %v1379 = vsel %vm1376, %v1378, %v1374
    %v1380 = vmul.f32 1.0, %v1379
    %v1381 = vtanh.pop %v1341
    %v1382 = vtanh.pop %v1342
    %v1385 = vrot.slane %v1294, 3
    %v1386 = vrot.slane %v1295, 3
    %v1387 = vsel %vm1178, %v1385, %v1386
    %v1390 = vmul.f32 %v1365, %v1387
    %v1391 = vmul.f32 %v1380, %v1386
    %1394 = vrot.lane.b32.xlu0 %v1381, 64
    %v1395 = vpop.permute.xlu0 %1394
    %1396 = vrot.lane.b32.xlu0 %v1382, 64
    %v1397 = vpop.permute.xlu0 %1396
    %v1400 = vmul.f32 %v1365, %v1395
    %v1401 = vmul.f32 %v1380, %v1397
    %1404 = vrot.lane.b32.xlu0 %v1400, 32
    %v1405 = vpop.permute.xlu0 %1404
    %1406 = vrot.lane.b32.xlu0 %v1401, 32
    %v1407 = vpop.permute.xlu0 %1406
    %v1410 = vadd.f32 %v1390, %v1405
    %v1411 = vadd.f32 %v1391, %v1407
    %v1412 = vtanh.pop %v1410
    %v1413 = vtanh.pop %v1411
    %1416 = vrot.lane.b32.xlu0 %v1412, 64
    %v1417 = vpop.permute.xlu0 %1416
    %1418 = vrot.lane.b32.xlu0 %v1413, 64
    %v1419 = vpop.permute.xlu0 %1418
    %v1422 = vmul.f32 %v1365, %v1417
    %v1423 = vmul.f32 %v1380, %v1419
    %vm1426 = vcmask 1043456
    %v1427 = vrot.slane %v1422, 4
    %v1428 = vrot.slane %v1423, 4
    %v1429 = vsel %vm1426, %v1427, %v1428
    %1430 = vrot.lane.b32.xlu0 %v1429, 32
    %v1431 = vpop.permute.xlu0 %1430
    %v1432 = vsel %vm154, %v1431, 0
    %1434 = vmatpush.msra.mxu0 0.0
    %1435 = vmatpush.msra.mxu0 0.0
    %1436 = vmatpush.msra.mxu0 0.0
    %1437 = vmatpush.msra.mxu0 0.0
    %1438 = vmatpush.msra.mxu0 0.0
    %1439 = vmatpush.msra.mxu0 0.0
    %1440 = vmatpush.msra.mxu0 0.0
    %1441 = vmatpush.msra.mxu0 0.0
    %1442 = vmatpush.msra.mxu0 0.0
    %1443 = vmatpush.msra.mxu0 0.0
    %1444 = vmatpush.msra.mxu0 0.0
    %1445 = vmatpush.msra.mxu0 0.0
    %1446 = vmatpush.msra.mxu0 %v956
    %1447 = vmatpush.msra.mxu0 %v955
    %1448 = vmatpush.msra.mxu0 %v954
    %1449 = vmatpush.msra.mxu0 %v953
    %1450 = vmatmul.f32.gmra.mxu0 %v1432
    %v1451 = vpop.f32.mrf.mxu0
    %v1452 = vadd.f32 0.0, %v1451
    %1453 = vdwg.mxu0
    %v1455 = vrot.slane %v1452, 7
    %v1457 = vadd.f32 %v951, %v1455
    %v1458 = vxor.u32 %v1457, 2147483648
    %v1459 = vmul.f32 %v1458, 1.442695
    %v1460 = vpow.pop %v1459
    %v1461 = vadd.f32 %v1460, 1.0
    %v1462 = vrcp.pop %v1461
    %v1463 = vmul.f32 %v1461, %v1462
    %v1464 = vsub.f32 1.0, %v1463
    %v1465 = vmul.f32 %v1462, %v1464
    %v1466 = vadd.f32 %v1462, %v1465
    %vm1467 = vweird.f32 %v1461
    %vm1468 = vweird.f32 %v1462
    %vm1469 = vmor %vm1467, %vm1468
    %v1470 = vsel %vm1469, %v1462, %v1466
    %v1471 = vand.u32 2147483647, %v1461
    %vm1472 = vcmp.eq.f32.partialorder %v1471, 8.507059e+37
    %v1473 = vand.u32 %v1461, 2147483648
    %v1474 = vor.u32 1.1754944e-38, %v1473
    %v1475 = vsel %vm1472, %v1474, %v1470
    %v1476 = vmul.f32 1.0, %v1475
    %v1477 = vtanh.pop %v1457
    %v1480 = vrot.slane %v1410, 3
    %v1481 = vrot.slane %v1411, 3
    %v1482 = vsel %vm1178, %v1480, %v1481
    %v1484 = vmul.f32 %v1476, %v1482
    %1486 = vrot.lane.b32.xlu0 %v1477, 64
    %v1487 = vpop.permute.xlu0 %1486
    %v1489 = vmul.f32 %v1476, %v1487
    %1491 = vrot.lane.b32.xlu0 %v1489, 32
    %v1492 = vpop.permute.xlu0 %1491
    %v1494 = vadd.f32 %v1484, %v1492
    %v1495 = vtanh.pop %v1494
    %1497 = vrot.lane.b32.xlu0 %v1495, 64
    %v1498 = vpop.permute.xlu0 %1497
    %v1500 = vmul.f32 %v1476, %v1498
    %v1501 = vld [vmem:[%s14] sm:$0x1]
    %v1503 = vperm.slane %v1501, 0
    %1504 = vrot.lane.b32.xlu0 %v1503, 96
    %v1505 = vpop.permute.xlu0 %1504
    %v1507 = vmul.f32 %v834, %v1505
    %1509 = vrot.lane.b32.xlu0 %v1507, 32
    %v1510 = vpop.permute.xlu0 %1509
    %vm1512 = vcmask 253952
    %v1513 = vsel %vm1512, %v1510, 0.0
    %1514 = vadd.xlane.f32.xlu0 %v1513
    %v1515 = vpop.xlane.xlu0 %1514
    %1516 = vrot.lane.b32.xlu0 %v1503, 64
    %v1517 = vpop.permute.xlu0 %1516
    %v1519 = vmul.f32 %v1500, %v1517
    %1521 = vrot.lane.b32.xlu0 %v1519, 32
    %v1522 = vpop.permute.xlu0 %1521
    %vm1524 = vcmask 259073
    %v1525 = vsel %vm1524, %v1522, 0.0
    %1526 = vadd.xlane.f32.xlu0 %v1525
    %v1527 = vpop.xlane.xlu0 %1526
    %v1528 = vperm.slane %v1515, 0
    %v1529 = vadd.f32 %v1527, %v1528
    %v1530 = vld [vmem:[#allocation2] sm:$0x1]
    %v1532 = vperm.slane %v1530, 0
    %v1534 = vadd.f32 %v1529, %v1532
    %v1535 = vmax.f32 %v1534, 0.0
    %vm1536 = vcmask 5121
    %1537 = vst.msk [vmem:[%s16 - $0x1] sm:$0x3e] %vm1536, %v1535
    // Predicated region
    $region78: #{lstm_dqn_forward.1} parent=1 // pred_check
      _
    $region79: #{lstm_dqn_forward.1} parent=1 // pred_check_branch
      %1539 = sbr.rel (0) target = $region81
    $region80: #{lstm_dqn_forward.1} parent=1 // pred_region
      _
    $region81: #{lstm_dqn_forward.1} parent=1 // pred_fallthru
      _
    // Predicated region
    $region82: #{lstm_dqn_forward.1} parent=1 // pred_check
      _
    $region83: #{lstm_dqn_forward.1} parent=1 // pred_check_branch
      %1541 = sbr.rel (0) target = $region85
    $region84: #{lstm_dqn_forward.1} parent=1 // pred_region
      _
    $region85: #{lstm_dqn_forward.1} parent=1 // pred_fallthru
      _
    %1542 = vsyncpa [#allocation4], 1
    %1543 = vsyncpa [#allocation6], 1

</llo_original>
